<compile_context>
chip_gen: v6e
topology: v6e:2x2x1
jax: 0.10.0
libtpu: 0.0.40
codegen_flags: <defaults>
</compile_context>

<pallas_src>
import functools

import jax
import jax.numpy as jnp
import numpy as np
from jax.experimental import pallas as pl
from jax.experimental.pallas import tpu as pltpu

_VMEM_LIMIT = 32 * 1024 * 1024   # explicit scoped-VMEM budget; safe on v5e/v6e/v7x


# --------------------------------------------------------------------------
# Pallas kernels (the hot path)
# --------------------------------------------------------------------------

def _mm_bias_kernel(x_ref, w_ref, b_ref, o_ref, *, relu):
    acc = jnp.dot(x_ref[...], w_ref[...], preferred_element_type=jnp.float32)
    acc = acc + b_ref[...]
    if relu:
        acc = jnp.maximum(acc, 0.0)
    o_ref[...] = acc.astype(o_ref.dtype)


def matmul_bias_act(x, w, b, relu, tm=512):
    """(M,K) @ (K,Co) + b [+ReLU] -- bf16 operands, f32 accumulate, M-tiled grid."""
    M, K = x.shape
    Co = w.shape[1]
    TM = M if M <= tm else (tm // 8) * 8          # full-M block, or a multiple of 8
    grid = (pl.cdiv(M, TM),)                      # ragged tail handled by Pallas
    xb = x.astype(jnp.bfloat16)
    wb = w.astype(jnp.bfloat16)
    b2 = b.reshape(1, Co).astype(jnp.float32)
    cost = pl.CostEstimate(flops=2 * M * K * Co, transcendentals=0,
                           bytes_accessed=2 * (M * K + K * Co) + 4 * (Co + M * Co))
    return pl.pallas_call(
        functools.partial(_mm_bias_kernel, relu=relu),
        out_shape=jax.ShapeDtypeStruct((M, Co), jnp.float32),
        grid=grid,
        in_specs=[pl.BlockSpec((TM, K), lambda i: (i, 0)),
                  pl.BlockSpec((K, Co), lambda i: (0, 0)),
                  pl.BlockSpec((1, Co), lambda i: (0, 0))],
        out_specs=pl.BlockSpec((TM, Co), lambda i: (i, 0)),
        compiler_params=pltpu.CompilerParams(
            dimension_semantics=("parallel",),
            vmem_limit_bytes=_VMEM_LIMIT),
        cost_estimate=cost,
    )(xb, wb, b2)


def _se_y_kernel(cof_ref, x_ref, y_ref):
    cof = cof_ref[...]
    n = cof.shape[0]
    r = jax.lax.broadcasted_iota(jnp.int32, (n, n), 0)
    c = jax.lax.broadcasted_iota(jnp.int32, (n, n), 1)
    z = jnp.where(r == c, 0.0, cof)               # cof - diag(diag(cof))
    y_ref[...] = jnp.dot(z, x_ref[...], preferred_element_type=jnp.float32)


def self_express_y(cof, x_flat, dt=2048):
    """y = (cof - diag(diag(cof))) @ x, tiled over the feature dim (z not written)."""
    B, D = x_flat.shape
    dt = D if D <= dt else dt                     # full-D block or a 128-multiple
    grid = (pl.cdiv(D, dt),)
    return pl.pallas_call(
        _se_y_kernel,
        out_shape=jax.ShapeDtypeStruct((B, D), jnp.float32),
        grid=grid,
        in_specs=[pl.BlockSpec((B, B), lambda i: (0, 0)),
                  pl.BlockSpec((B, dt), lambda i: (0, i))],
        out_specs=pl.BlockSpec((B, dt), lambda i: (0, i)),
        compiler_params=pltpu.CompilerParams(
            dimension_semantics=("parallel",),
            vmem_limit_bytes=_VMEM_LIMIT),
    )(cof.astype(jnp.float32), x_flat.astype(jnp.float32))


def _mask_diag_kernel(cof_ref, z_ref):
    cof = cof_ref[...]
    n = cof.shape[0]
    r = jax.lax.broadcasted_iota(jnp.int32, (n, n), 0)
    c = jax.lax.broadcasted_iota(jnp.int32, (n, n), 1)
    z_ref[...] = jnp.where(r == c, 0.0, cof)


def mask_diag(cof):
    B = cof.shape[0]
    return pl.pallas_call(
        _mask_diag_kernel,
        out_shape=jax.ShapeDtypeStruct((B, B), jnp.float32),
    )(cof.astype(jnp.float32))


# --------------------------------------------------------------------------
# Conv / ConvTranspose lowering (thin XLA glue around the Pallas matmul)
# --------------------------------------------------------------------------

def _im2col(x_pad, k, s):
    N, Hp, Wp, C = x_pad.shape
    Ho = (Hp - k) // s + 1
    Wo = (Wp - k) // s + 1
    cols = []
    for kh in range(k):
        for kw in range(k):
            cols.append(x_pad[:, kh:kh + s * (Ho - 1) + 1:s,
                              kw:kw + s * (Wo - 1) + 1:s, :])
    patches = jnp.concatenate(cols, axis=-1)      # (kh, kw, ci) order == HWIO flatten
    return patches.reshape(N * Ho * Wo, k * k * C), (N, Ho, Wo)


# TODO(synk): fold the 3x3/stride-2 tap gather into the matmul kernel (taps sliced
# from a VMEM-resident input tile) to remove the remaining ~2.25x patch HBM traffic
# on the encoder path.
def conv2d_s2(x, w_flat, b):
    """Conv2d(k=3, stride=2, padding=1) + ReLU on NHWC input (fused Co=128)."""
    xb = x.astype(jnp.bfloat16)
    x_pad = jnp.pad(xb, ((0, 0), (1, 1), (1, 1), (0, 0)))
    patches, (N, Ho, Wo) = _im2col(x_pad, 3, 2)
    Co = w_flat.shape[1]
    y = matmul_bias_act(patches, w_flat, b, relu=True)
    return y.reshape(N, Ho, Wo, Co)


def deconv2d_s2(x, layer, relu, co_keep=None):
    """ConvTranspose2d(k=3, s=2, p=1, op=1) via 4-phase (sub-pixel) decomposition:
    each output-parity class is one small stride-1 matmul over the original x
    (no zero-upsampled input, no wasted MACs)."""
    N, H, W, C = x.shape
    xb = x.astype(jnp.bfloat16)
    xp = jnp.pad(xb, ((0, 0), (0, 1), (0, 1), (0, 0)))      # bottom/right halo
    x00 = xb
    x01 = xp[:, :H, 1:, :]
    x10 = xp[:, 1:, :W, :]
    x11 = xp[:, 1:, 1:, :]
    M = N * H * W

    def cat(*ts):
        ts = [t.reshape(M, C) for t in ts]
        return ts[0] if len(ts) == 1 else jnp.concatenate(ts, axis=1)

    b = layer['b']
    co = b.shape[0]
    co_keep = co if co_keep is None else co_keep
    phase_in = (cat(x00), cat(x00, x01), cat(x00, x10), cat(x00, x01, x10, x11))
    phase_w = (layer['w00'], layer['w01'], layer['w10'], layer['w11'])
    outs = []
    for xin, w in zip(phase_in, phase_w):
        p = matmul_bias_act(xin, w, b, relu)
        if co_keep < co:
            p = p[:, :co_keep]                               # drop lane padding
        outs.append(p.reshape(N, H, W, co_keep))
    y = jnp.zeros((N, 2 * H, 2 * W, co_keep), jnp.float32)
    y = y.at[:, 0::2, 0::2, :].set(outs[0])
    y = y.at[:, 0::2, 1::2, :].set(outs[1])
    y = y.at[:, 1::2, 0::2, :].set(outs[2])
    y = y.at[:, 1::2, 1::2, :].set(outs[3])
    return y


# --------------------------------------------------------------------------
# Deterministic parameter init (same shapes as the PyTorch module) + fusion
# --------------------------------------------------------------------------

def _init_conv(key, cin, cout, scale=0.1):
    kw, kb = jax.random.split(key)
    w = scale * jax.random.normal(kw, (3, 3, cin, cout), jnp.float32)     # HWIO
    b = 0.01 * jax.random.normal(kb, (cout,), jnp.float32)
    return w, b


def _init_deconv(key, cin, cout, scale=0.1):
    kw, kb = jax.random.split(key)
    # PyTorch ConvTranspose2d weight layout: (cin, cout, kh, kw)
    w_t = scale * jax.random.normal(kw, (cin, cout, 3, 3), jnp.float32)
    # equivalent stride-1 conv kernel (HWIO): w[kh,kw,ci,co] = w_t[ci,co,2-kh,2-kw]
    w = jnp.transpose(w_t[:, :, ::-1, ::-1], (2, 3, 0, 1))
    b = 0.01 * jax.random.normal(kb, (cout,), jnp.float32)
    return w, b


def init_params(key, batch_size):
    """Per-branch parameters, same structure as the PyTorch module."""
    keys = iter(jax.random.split(key, 64))

    def enc(cin, cout):
        return [_init_conv(next(keys), cin, 64),
                _init_conv(next(keys), 64, 64),
                _init_conv(next(keys), 64, cout)]

    def dec(cin, cout):
        return [_init_deconv(next(keys), cin, 64),
                _init_deconv(next(keys), 64, 64),
                _init_deconv(next(keys), 64, cout)]

    ones = 1e-8 * jnp.ones((batch_size, batch_size), jnp.float32)
    return {
        'encoder1': enc(3, 64), 'encoder2': enc(1, 64),
        'encoder1_single': enc(3, 64), 'encoder2_single': enc(1, 64),
        'decoder1': dec(64, 3), 'decoder2': dec(64, 1),
        'decoder1_single': dec(64, 3), 'decoder2_single': dec(64, 1),
        'cof1': ones, 'cof2': ones, 'cof_common': ones,
    }


def _block_diag_hwio(wa, wb):
    ci, co = wa.shape[2], wa.shape[3]
    w = jnp.zeros((3, 3, 2 * ci, 2 * co), jnp.float32)
    return w.at[:, :, :ci, :co].set(wa).at[:, :, ci:, co:].set(wb)


def _phase_weights(wf):
    """Per-output-parity weight matrices for the 4-phase transposed conv."""
    w00 = wf[1, 1]
    w01 = jnp.concatenate([wf[1, 0], wf[1, 2]], axis=0)
    w10 = jnp.concatenate([wf[0, 1], wf[2, 1]], axis=0)
    w11 = jnp.concatenate([wf[0, 0], wf[0, 2], wf[2, 0], wf[2, 2]], axis=0)
    return w00, w01, w10, w11


def _fuse_encoder_pair(lay_a, lay_b):
    layers = []
    for l, ((wa, ba), (wb, bb)) in enumerate(zip(lay_a, lay_b)):
        if l == 0:                       # same input image -> plain Co concat
            w = jnp.concatenate([wa, wb], axis=-1)
        else:                            # distinct branch inputs -> block-diagonal
            w = _block_diag_hwio(wa, wb)
        b = jnp.concatenate([ba, bb], axis=0)
        co = w.shape[-1]
        layers.append({'w': w.reshape(-1, co).astype(jnp.bfloat16),
                       'b': b.astype(jnp.float32)})
    return layers


def _fuse_decoder_pair(lay_a, lay_b, pad_to=128):
    layers = []
    for (wa, ba), (wb, bb) in zip(lay_a, lay_b):
        wf = _block_diag_hwio(wa, wb)
        b = jnp.concatenate([ba, bb], axis=0)
        co = b.shape[0]
        if co < pad_to:                  # tiny final Co (3+3 / 1+1): pad for lane-dense stores
            wf = jnp.pad(wf, ((0, 0), (0, 0), (0, 0), (0, pad_to - co)))
            b = jnp.pad(b, (0, pad_to - co))
        w00, w01, w10, w11 = _phase_weights(wf.astype(jnp.bfloat16))
        layers.append({'w00': w00, 'w01': w01, 'w10': w10, 'w11': w11,
                       'b': b.astype(jnp.float32)})
    return layers


def build_fused_params(raw):
    return {
        'enc1': _fuse_encoder_pair(raw['encoder1'], raw['encoder1_single']),
        'enc2': _fuse_encoder_pair(raw['encoder2'], raw['encoder2_single']),
        'dec1': _fuse_decoder_pair(raw['decoder1'], raw['decoder1_single']),
        'dec2': _fuse_decoder_pair(raw['decoder2'], raw['decoder2_single']),
        'cof1': raw['cof1'], 'cof2': raw['cof2'], 'cof_common': raw['cof_common'],
    }


# --------------------------------------------------------------------------
# Forward pass (AutoEncoderInit.forward)
# --------------------------------------------------------------------------

def _run_encoder(layers, x):
    for layer in layers:
        x = conv2d_s2(x, layer['w'], layer['b'])
    return x            # (N, H/8, W/8, 128): [..., :64] main branch, [..., 64:] _single


def _run_decoder(layers, x, final_co):
    x = deconv2d_s2(x, layers[0], relu=True)
    x = deconv2d_s2(x, layers[1], relu=True)
    x = deconv2d_s2(x, layers[2], relu=False, co_keep=final_co)   # final: no ReLU
    return x


def _nchw(x):
    return jnp.transpose(x, (0, 3, 1, 2))


def forward(params, view0_nchw, view1_nchw, ft=False):
    v0 = jnp.transpose(view0_nchw, (0, 2, 3, 1)).astype(jnp.float32)
    v1 = jnp.transpose(view1_nchw, (0, 2, 3, 1)).astype(jnp.float32)

    e1 = _run_encoder(params['enc1'], v0)        # [latent1 | diversity_latent_1]
    e2 = _run_encoder(params['enc2'], v1)        # [latent2 | diversity_latent_2]
    latent1, div1 = e1[..., :64], e1[..., 64:]
    latent2, div2 = e2[..., :64], e2[..., 64:]

    if not ft:
        out1 = _run_decoder(params['dec1'], e1, final_co=6)   # [view1_r | view1_rd]
        out2 = _run_decoder(params['dec2'], e2, final_co=2)   # [view2_r | view2_rd]
        return (_nchw(out1[..., :3]), _nchw(out2[..., :1]),
                _nchw(out1[..., 3:6]), _nchw(out2[..., 1:2]))

    B = latent1.shape[0]
    # NOTE: features are flattened in NHWC order; self-expression mixes samples
    # independently per feature, so reshaping back gives an identical tensor.
    d1_se = self_express_y(params['cof1'], div1.reshape(B, -1)).reshape(div1.shape)
    d2_se = self_express_y(params['cof2'], div2.reshape(B, -1)).reshape(div2.shape)
    l1_flat = latent1.reshape(B, -1)
    l2_flat = latent2.reshape(B, -1)
    lse = self_express_y(params['cof_common'],
                         jnp.concatenate([l1_flat, l2_flat], axis=1))  # one masked cof, both views
    D1 = l1_flat.shape[1]
    l1_se = lse[:, :D1].reshape(latent1.shape)
    l2_se = lse[:, D1:].reshape(latent2.shape)
    z_common = mask_diag(params['cof_common'])
    z1, z2 = params['cof1'], params['cof2']      # SelfExpression returns the raw cof

    out1 = _run_decoder(params['dec1'], jnp.concatenate([l1_se, d1_se], -1), final_co=6)
    out2 = _run_decoder(params['dec2'], jnp.concatenate([l2_se, d2_se], -1), final_co=2)
    return (_nchw(out1[..., :3]), _nchw(out2[..., :1]),
            _nchw(out1[..., 3:6]), _nchw(out2[..., 1:2]),
            z1, z2, z_common,
            _nchw(div1), _nchw(div2), _nchw(latent1), _nchw(latent2),
            _nchw(d1_se), _nchw(d2_se), _nchw(l1_se), _nchw(l2_se))


# --------------------------------------------------------------------------
# Pure-JAX reference (bf16 operands, f32 accumulation) for the ft=False path
# --------------------------------------------------------------------------

def _ref_conv(x, w, b, relu):
    y = jax.lax.conv_general_dilated(
        x.astype(jnp.bfloat16), w.astype(jnp.bfloat16), (2, 2), ((1, 1), (1, 1)),
        dimension_numbers=('NHWC', 'HWIO', 'NHWC'),
        preferred_element_type=jnp.float32) + b
    return jnp.maximum(y, 0.0) if relu else y


def _ref_deconv(x, w, b, relu):
    y = jax.lax.conv_general_dilated(
        x.astype(jnp.bfloat16), w.astype(jnp.bfloat16), (1, 1), ((1, 2), (1, 2)),
        lhs_dilation=(2, 2),
        dimension_numbers=('NHWC', 'HWIO', 'NHWC'),
        preferred_element_type=jnp.float32) + b
    return jnp.maximum(y, 0.0) if relu else y


def ref_forward(raw, view0_nchw, view1_nchw):
    v0 = jnp.transpose(view0_nchw, (0, 2, 3, 1))
    v1 = jnp.transpose(view1_nchw, (0, 2, 3, 1))

    def enc(layers, x):
        for w, b in layers:
            x = _ref_conv(x, w, b, True)
        return x

    def dec(layers, x):
        x = _ref_deconv(x, layers[0][0], layers[0][1], True)
        x = _ref_deconv(x, layers[1][0], layers[1][1], True)
        x = _ref_deconv(x, layers[2][0], layers[2][1], False)
        return x

    l1 = enc(raw['encoder1'], v0)
    l2 = enc(raw['encoder2'], v1)
    d1 = enc(raw['encoder1_single'], v0)
    d2 = enc(raw['encoder2_single'], v1)
    return (_nchw(dec(raw['decoder1'], l1)), _nchw(dec(raw['decoder2'], l2)),
            _nchw(dec(raw['decoder1_single'], d1)), _nchw(dec(raw['decoder2_single'], d2)))


# --------------------------------------------------------------------------

if __name__ == "__main__":
    B, H, W = 4, 16, 16
    key = jax.random.PRNGKey(0)
    kp, k0, k1, k2, k3, k4 = jax.random.split(key, 6)

    raw = init_params(kp, B)
    params = build_fused_params(raw)

    view0 = jax.random.normal(k0, (B, 3, H, W), jnp.float32)   # NCHW, like PyTorch
    view1 = jax.random.normal(k1, (B, 1, H, W), jnp.float32)

    # --- unit check: tiled matmul kernel (grid > 1, ragged tail, bf16 operands) ---
    xm = jax.random.normal(k2, (1100, 288), jnp.float32)
    wm = 0.05 * jax.random.normal(k3, (288, 128), jnp.float32)
    bm = 0.01 * jax.random.normal(k4, (128,), jnp.float32)
    ym = jax.block_until_ready(matmul_bias_act(xm, wm, bm, relu=True))
    ym_ref = jnp.maximum(
        jnp.dot(xm.astype(jnp.bfloat16), wm.astype(jnp.bfloat16),
                preferred_element_type=jnp.float32) + bm, 0.0)
    np.testing.assert_allclose(np.asarray(ym), np.asarray(ym_ref), rtol=2e-2, atol=2e-2)

    fwd = jax.jit(forward, static_argnames='ft')

    # --- ft=False path (module default) ---
    outs = jax.block_until_ready(fwd(params, view0, view1, ft=False))
    assert outs[0].shape == (B, 3, H, W) and outs[1].shape == (B, 1, H, W)
    assert outs[2].shape == (B, 3, H, W) and outs[3].shape == (B, 1, H, W)

    refs = ref_forward(raw, view0, view1)
    for o, r in zip(outs, refs):
        np.testing.assert_allclose(np.asarray(o), np.asarray(r), rtol=2e-2, atol=2e-2)

    # --- ft=True (self-expression) path ---
    outs_ft = jax.block_until_ready(fwd(params, view0, view1, ft=True))
    assert len(outs_ft) == 15 and outs_ft[6].shape == (B, B)

    z_common = np.asarray(outs_ft[6])
    np.testing.assert_allclose(z_common, 1e-8 * (np.ones((B, B)) - np.eye(B)),
                               rtol=1e-6, atol=1e-12)
    latent1_f = np.asarray(outs_ft[9]).reshape(B, -1)
    l1_se_f = np.asarray(outs_ft[13]).reshape(B, -1)
    np.testing.assert_allclose(l1_se_f, z_common @ latent1_f, rtol=2e-2, atol=1e-9)
    div1_f = np.asarray(outs_ft[7]).reshape(B, -1)
    d1_se_f = np.asarray(outs_ft[11]).reshape(B, -1)
    z1 = np.asarray(outs_ft[4])
    z1m = z1 - np.diag(np.diag(z1))
    np.testing.assert_allclose(d1_se_f, z1m @ div1_f, rtol=2e-2, atol=1e-9)

    print("KERNEL_OK")
</pallas_src>

<mosaic_0001>
module attributes {stable_mosaic.version = 11 : i64} {
  func.func @_mm_bias_kernel(%arg0: i32, %arg1: memref<512x288xbf16, #tpu.memory_space<vmem>>, %arg2: memref<288x128xbf16, #tpu.memory_space<vmem>>, %arg3: memref<1x128xf32, #tpu.memory_space<vmem>>, %arg4: memref<512x128xf32, #tpu.memory_space<vmem>>) attributes {dimension_semantics = [#tpu.dimension_semantics<parallel>], iteration_bounds = array<i64: 3>, scalar_prefetch = 0 : i64, scratch_operands = 0 : i64, tpu.core_type = #tpu.core_type<tc>, window_params = [{transform_indices = @transform_0, window_bounds = array<i64: 512, 288>}, {pipeline_mode = #tpu.pipeline_mode<synchronous>, transform_indices = @transform_1, window_bounds = array<i64: 288, 128>}, {pipeline_mode = #tpu.pipeline_mode<synchronous>, transform_indices = @transform_2, window_bounds = array<i64: 1, 128>}, {transform_indices = @transform_3, window_bounds = array<i64: 512, 128>}]} {
    %c0 = arith.constant 0 : index
    %c0_0 = arith.constant 0 : index
    %0 = vector.load %arg1[%c0, %c0_0] : memref<512x288xbf16, #tpu.memory_space<vmem>>, vector<512x288xbf16>
    %c0_1 = arith.constant 0 : index
    %c0_2 = arith.constant 0 : index
    %1 = vector.load %arg2[%c0_1, %c0_2] : memref<288x128xbf16, #tpu.memory_space<vmem>>, vector<288x128xbf16>
    %cst = arith.constant dense<0.000000e+00> : vector<512x128xf32>
    %2 = tpu.matmul %0, %1, %cst {dimension_numbers = #tpu.dot_dimension_numbers<[1], [0], [0], [1], [0, 0, 1, 1], [], []>} : vector<512x288xbf16>, vector<288x128xbf16>, vector<512x128xf32> -> vector<512x128xf32>
    %c0_3 = arith.constant 0 : index
    %c0_4 = arith.constant 0 : index
    %3 = vector.load %arg3[%c0_3, %c0_4] : memref<1x128xf32, #tpu.memory_space<vmem>>, vector<1x128xf32>
    %4 = vector.broadcast %3 : vector<1x128xf32> to vector<512x128xf32>
    %5 = arith.addf %2, %4 : vector<512x128xf32>
    %cst_5 = arith.constant 0.000000e+00 : f32
    %6 = vector.broadcast %cst_5 : f32 to vector<512x128xf32>
    %7 = arith.maximumf %5, %6 : vector<512x128xf32>
    %c0_6 = arith.constant 0 : index
    %c0_7 = arith.constant 0 : index
    %8 = vector.load %arg4[%c0_6, %c0_7] : memref<512x128xf32, #tpu.memory_space<vmem>>, vector<512x128xf32>
    tpu.vector_store %arg4[%c0_6, %c0_7], %7 {strides = array<i32>} : memref<512x128xf32, #tpu.memory_space<vmem>>, vector<512x128xf32>,
    return
  }
  func.func @transform_0(%arg0: i32) -> (i32, i32) {
    %c0_i32 = arith.constant 0 : i32
    %c0_i32_0 = arith.constant 0 : i32
    return %arg0, %c0_i32 : i32, i32
  }
  func.func @transform_1(%arg0: i32) -> (i32, i32) {
    %c0_i32 = arith.constant 0 : i32
    %c0_i32_0 = arith.constant 0 : i32
    %c0_i32_1 = arith.constant 0 : i32
    return %c0_i32, %c0_i32_0 : i32, i32
  }
  func.func @transform_2(%arg0: i32) -> (i32, i32) {
    %c0_i32 = arith.constant 0 : i32
    %c0_i32_0 = arith.constant 0 : i32
    %c0_i32_1 = arith.constant 0 : i32
    return %c0_i32, %c0_i32_0 : i32, i32
  }
  func.func @transform_3(%arg0: i32) -> (i32, i32) {
    %c0_i32 = arith.constant 0 : i32
    %c0_i32_0 = arith.constant 0 : i32
    return %arg0, %c0_i32 : i32, i32
  }
}

</mosaic_0001>

<llo_original>
// kernel: tpu_custom_call.1
$region0: #{tpu_custom_call.1}
  #allocation0 [shape = 'u32[]', space=smem, size = 0x4, offset = 0x4, fixed_abs, tag = 'smem constant byte address 0x4 - core index']
  #allocation1 [shape = 'u32[144,128]{1,0:T(1,128)}', space=vmem, size = 0x12000, scoped, tag = 'internal scratch']
  %s0 = inlined_call_operand.vmem [shape: bf16[1100,288], index: 0, kind: input, shape index: {}]
  %s1 = inlined_call_operand.vmem [shape: bf16[288,128], index: 1, kind: input, shape index: {}]
  %s2 = inlined_call_operand.vmem [shape: f32[1,128], index: 2, kind: input, shape index: {}]
  %s3 = inlined_call_operand.hbm [shape: f32[1100,128], index: 3, kind: output, shape index: {}]
  %s4 = sld [smem:[#allocation0]]
  $region45: #{tpu_custom_call.1} parent=0
    _
  %s6 = ssub.s32 1, %s4
  %s7 = scalar_select 0, %s6, %s4
  $region1: #{tpu_custom_call.1} parent=0
    #allocation2 [shape = 'u8[524288]{0}', space=vmem, size = 0x80000, scoped, tag = 'output window, operand 0']
    #allocation3 [shape = 's32[2]{0}', space=sflag, size = 0x8, scoped, tag = 'scoped memory for tpu_custom_call.1']
    %8 = vsyncpa [#allocation3], 0
    %s9 = scalar_lea.sflag [#allocation3], 1
    %10 = vsyncpa %s9, 0
    loop: start=0, step=1, limit=5
    $region2: #{tpu_custom_call.1} parent=1 // loop_pre_header
      _
    $region3: #{tpu_custom_call.1} parent=1 // loop_header
      %s12 = sphi 0, %s16
      %p13 = scmp.ge.s32.totalorder %s12, 5
      %s22 = sphi 0, %s24
      %s25 = sphi 0, %s22
      %s26 = sphi 0, %s25
      %s42 = sphi 0, %s26
      %s46 = sphi 0, %s46
      %s48 = sphi 0, %s46
      %s49 = sphi 0, %s48
      %s63 = sphi 0, %s49
      %s67 = sphi 0, %s67
      %s69 = sphi 0, %s67
      %s70 = sphi 0, %s69
      %s84 = sphi 0, %s70
      %s90 = sphi 0, %s92
      %s93 = sphi 0, %s90
      %s94 = sphi 0, %s93
      %s110 = sphi 0, %s94
    $region4: #{tpu_custom_call.1} parent=1 // loop_header_branch
      %15 = sbr.rel (%p13) target = $region8
    $region5: #{tpu_custom_call.1} parent=1 // loop_body
      %s17 = ssub.s32 %s12, 1
      %s18 = ssub.s32 %s12, 2
      %s19 = sadd.s32 %s12, 1
      %s20 = ssub.s32 %s12, %s19
      %p21 = scmp.eq.s32.totalorder %s20, 0
      %s23 = sadd.s32 %s22, 1
      %s24 = scalar_select %p21, %s22, %s23
      %p27 = pneg %p21
      %p28 = scmp.eq.s32.totalorder %s12, 2
      %p29 = por %p27, %p28
      %p30 = scmp.ne.s32.totalorder %s22, %s25
      %p31 = scmp.eq.s32.totalorder %s12, 0
      %p32 = por %p30, %p31
      %p33 = scmp.ne.s32.totalorder %s22, %s25
      %p34 = scmp.eq.s32.totalorder %s17, 2
      %p35 = por %p33, %p34
      %p36 = scmp.ne.s32.totalorder %s25, %s26
      %p37 = scmp.eq.s32.totalorder %s17, 0
      %p38 = por %p36, %p37
      %p39 = scmp.ne.s32.totalorder %s25, %s26
      %p40 = scmp.eq.s32.totalorder %s18, 2
      %p41 = por %p39, %p40
      %p43 = scmp.ne.s32.totalorder %s26, %s42
      %p44 = scmp.eq.s32.totalorder %s18, 0
      %p45 = por %p43, %p44
      %s47 = sadd.s32 %s46, 1
      %p50 = scmp.eq.s32.totalorder %s12, 2
      %p51 = scmp.ne.s32.totalorder %s46, %s48
      %p52 = scmp.eq.s32.totalorder %s12, 0
      %p53 = por %p51, %p52
      %p54 = scmp.ne.s32.totalorder %s46, %s48
      %p55 = scmp.eq.s32.totalorder %s17, 2
      %p56 = por %p54, %p55
      %p57 = scmp.ne.s32.totalorder %s48, %s49
      %p58 = scmp.eq.s32.totalorder %s17, 0
      %p59 = por %p57, %p58
      %p60 = scmp.ne.s32.totalorder %s48, %s49
      %p61 = scmp.eq.s32.totalorder %s18, 2
      %p62 = por %p60, %p61
      %p64 = scmp.ne.s32.totalorder %s49, %s63
      %p65 = scmp.eq.s32.totalorder %s18, 0
      %p66 = por %p64, %p65
      %s68 = sadd.s32 %s67, 1
      %p71 = scmp.eq.s32.totalorder %s12, 2
      %p72 = scmp.ne.s32.totalorder %s67, %s69
      %p73 = scmp.eq.s32.totalorder %s12, 0
      %p74 = por %p72, %p73
      %p75 = scmp.ne.s32.totalorder %s67, %s69
      %p76 = scmp.eq.s32.totalorder %s17, 2
      %p77 = por %p75, %p76
      %p78 = scmp.ne.s32.totalorder %s69, %s70
      %p79 = scmp.eq.s32.totalorder %s17, 0
      %p80 = por %p78, %p79
      %p81 = scmp.ne.s32.totalorder %s69, %s70
      %p82 = scmp.eq.s32.totalorder %s18, 2
      %p83 = por %p81, %p82
      %p85 = scmp.ne.s32.totalorder %s70, %s84
      %p86 = scmp.eq.s32.totalorder %s18, 0
      %p87 = por %p85, %p86
      %s88 = ssub.s32 %s12, %s19
      %p89 = scmp.eq.s32.totalorder %s88, 0
      %s91 = sadd.s32 %s90, 1
      %s92 = scalar_select %p89, %s90, %s91
      %p95 = pneg %p89
      %p96 = scmp.eq.s32.totalorder %s12, 2
      %p97 = por %p95, %p96
      %p98 = scmp.ne.s32.totalorder %s90, %s93
      %p99 = scmp.eq.s32.totalorder %s12, 0
      %p100 = por %p98, %p99
      %p101 = scmp.ne.s32.totalorder %s90, %s93
      %p102 = scmp.eq.s32.totalorder %s17, 2
      %p103 = por %p101, %p102
      %p104 = scmp.ne.s32.totalorder %s93, %s94
      %p105 = scmp.eq.s32.totalorder %s17, 0
      %p106 = por %p104, %p105
      %p107 = scmp.ne.s32.totalorder %s93, %s94
      %p108 = scmp.eq.s32.totalorder %s18, 2
      %p109 = por %p107, %p108
      %p111 = scmp.ne.s32.totalorder %s94, %s110
      %p112 = scmp.eq.s32.totalorder %s18, 0
      %p113 = por %p111, %p112
      %p114 = scmp.le.s32.totalorder 1, %s12
      %p115 = scmp.lt.s32.totalorder %s12, 4
      %p116 = pnand %p114, %p115
      %p117 = pneg %p116
      // Predicated region
      $region9: #{tpu_custom_call.1} parent=5 // pred_check
        _
      $region10: #{tpu_custom_call.1} parent=5 // pred_check_branch
        %119 = sbr.rel (%p116) target = $region12
      $region11: #{tpu_custom_call.1} parent=5 // pred_region
        %s120 = ssub.s32 %s12, 1
        // Predicated region
        $region13: #{tpu_custom_call.1} parent=11 // pred_check
          %p121 = pneg %p59
        $region14: #{tpu_custom_call.1} parent=11 // pred_check_branch
          %123 = sbr.rel (%p121) target = $region16
        $region15: #{tpu_custom_call.1} parent=11 // pred_region
          _
        $region16: #{tpu_custom_call.1} parent=11 // pred_fallthru
          _
        // Predicated region
        $region17: #{tpu_custom_call.1} parent=11 // pred_check
          %p124 = pneg %p80
        $region18: #{tpu_custom_call.1} parent=11 // pred_check_branch
          %126 = sbr.rel (%p124) target = $region20
        $region19: #{tpu_custom_call.1} parent=11 // pred_region
          _
        $region20: #{tpu_custom_call.1} parent=11 // pred_fallthru
          _
      $region12: #{tpu_custom_call.1} parent=5 // pred_fallthru
        _
      %p127 = scmp.lt.s32.totalorder %s12, 3
      // Predicated region
      $region21: #{tpu_custom_call.1} parent=5 // pred_check
        %p128 = pneg %p127
      $region22: #{tpu_custom_call.1} parent=5 // pred_check_branch
        %130 = sbr.rel (%p128) target = $region24
      $region23: #{tpu_custom_call.1} parent=5 // pred_region
        // Predicated region
        $region25: #{tpu_custom_call.1} parent=23 // pred_check
          %p131 = pneg %p32
        $region26: #{tpu_custom_call.1} parent=23 // pred_check_branch
          %133 = sbr.rel (%p131) target = $region28
        $region27: #{tpu_custom_call.1} parent=23 // pred_region
          %s134 = smul.u32 64, %s12
          %s135 = ssub.s32 138, %s134
          %p136 = scmp.lt.s32.totalorder %s135, 64
          %s137 = scalar_select %p136, %s135, 64
          %s138 = smul.u32 64, %s137
          %s139 = smul.u32 %s138, 3
          %p140 = scmp.lt.s32.totalorder %s134, 137
          %s141 = scalar_select %p140, %s134, 137
          %s142 = smul.addr %s141, 3
          %s143 = smul.addr %s142, 4
          %s144 = scalar_lea.vmem %s0, %s143
          %s145 = smul.u32 64, %s12
          %s146 = ssub.s32 138, %s145
          %p147 = scmp.lt.s32.totalorder %s146, 64
          %s148 = scalar_select %p147, %s146, 64
          %s149 = smul.u32 64, %s148
          %s150 = smul.u32 %s149, 3
        $region28: #{tpu_custom_call.1} parent=23 // pred_fallthru
          _
      $region24: #{tpu_custom_call.1} parent=5 // pred_fallthru
        _
      %p151 = scmp.le.s32.totalorder 1, %s12
      %p152 = scmp.lt.s32.totalorder %s12, 4
      %p153 = pnand %p151, %p152
      %p154 = pneg %p153
      // Predicated region
      $region29: #{tpu_custom_call.1} parent=5 // pred_check
        _
      $region30: #{tpu_custom_call.1} parent=5 // pred_check_branch
        %156 = sbr.rel (%p153) target = $region32
      $region31: #{tpu_custom_call.1} parent=5 // pred_region
        %s157 = ssub.s32 %s12, 1
        %s158 = smul.u32 64, %s17
        %s159 = ssub.s32 138, %s158
        %p160 = scmp.lt.s32.totalorder %s159, 64
        %s161 = scalar_select %p160, %s159, 64
        %s162 = smul.u32 64, %s161
        %s163 = smul.u32 %s162, 3
        %p164 = scmp.lt.s32.totalorder %s158, 137
        %s165 = scalar_select %p164, %s158, 137
        %s166 = smul.addr %s165, 3
        %s167 = smul.addr %s166, 4
        %s168 = scalar_lea.vmem %s0, %s167
        %p169 = pneg %p38
        %p170 = pneg %p35
        %p171 = pneg %p59
        %p172 = pneg %p56
        %p173 = pneg %p80
        %p174 = pneg %p77
        %p175 = pneg %p106
        %p176 = pneg %p103
        %s177 = sand.u32 %s93, 1
        %s178 = scalar_lea.sflag [#allocation3], %s177
        %s179 = sand.u32 %s93, 1
        %s180 = smul.addr %s179, 512
        %s181 = scalar_lea.vmem [#allocation2], %s180
        %s182 = smul.u32 64, %s17
        %s183 = ssub.s32 138, %s182
        %p184 = scmp.lt.s32.totalorder %s183, 64
        %s185 = scalar_select %p184, %s183, 64
        %s186 = smul.u32 64, %s185
        %s187 = smul.u32 %s186, 3
        %p188 = scmp.lt.s32.totalorder %s182, 137
        %s189 = scalar_select %p188, %s182, 137
        %s190 = smul.addr %s189, 3
        %s191 = smul.addr %s190, 4
        %s192 = scalar_lea.vmem %s0, %s191
        %s193 = smul.u32 64, %s17
        %s194 = ssub.s32 138, %s193
        %p195 = scmp.lt.s32.totalorder %s194, 64
        %s196 = scalar_select %p195, %s194, 64
        %s197 = smul.u32 64, %s196
        %s198 = smul.u32 %s197, 3
        %s199 = smul.u32 64, %s17
        %s200 = ssub.s32 138, %s199
        %p201 = scmp.lt.s32.totalorder %s200, 64
        %s202 = scalar_select %p201, %s200, 64
        %s203 = smul.u32 128, %s202
        %v205 = vld [vmem:[%s192] sm:$0xff]
        %v206 = vld [vmem:[%s192 + $0x8] sm:$0xf]
        %v207 = vld [vmem:[%s192 + $0xc] sm:$0xff]
        %v208 = vld [vmem:[%s192 + $0x14] sm:$0xf]
        %v209 = vld [vmem:[%s192 + $0x18] sm:$0xff]
        %v210 = vld [vmem:[%s192 + $0x20] sm:$0xf]
        %v211 = vld [vmem:[%s192 + $0x24] sm:$0xff]
        %v212 = vld [vmem:[%s192 + $0x2c] sm:$0xf]
        %v213 = vld [vmem:[%s192 + $0x30] sm:$0xff]
        %v214 = vld [vmem:[%s192 + $0x38] sm:$0xf]
        %v215 = vld [vmem:[%s192 + $0x3c] sm:$0xff]
        %v216 = vld [vmem:[%s192 + $0x44] sm:$0xf]
        %v217 = vld [vmem:[%s192 + $0x48] sm:$0xff]
        %v218 = vld [vmem:[%s192 + $0x50] sm:$0xf]
        %v219 = vld [vmem:[%s192 + $0x54] sm:$0xff]
        %v220 = vld [vmem:[%s192 + $0x5c] sm:$0xf]
        %v221 = vld [vmem:[%s192 + $0x60] sm:$0xff]
        %v222 = vld [vmem:[%s192 + $0x68] sm:$0xf]
        %v223 = vld [vmem:[%s192 + $0x6c] sm:$0xff]
        %v224 = vld [vmem:[%s192 + $0x74] sm:$0xf]
        %v225 = vld [vmem:[%s192 + $0x78] sm:$0xff]
        %v226 = vld [vmem:[%s192 + $0x80] sm:$0xf]
        %v227 = vld [vmem:[%s192 + $0x84] sm:$0xff]
        %v228 = vld [vmem:[%s192 + $0x8c] sm:$0xf]
        %v229 = vld [vmem:[%s192 + $0x90] sm:$0xff]
        %v230 = vld [vmem:[%s192 + $0x98] sm:$0xf]
        %v231 = vld [vmem:[%s192 + $0x9c] sm:$0xff]
        %v232 = vld [vmem:[%s192 + $0xa4] sm:$0xf]
        %v233 = vld [vmem:[%s192 + $0xa8] sm:$0xff]
        %v234 = vld [vmem:[%s192 + $0xb0] sm:$0xf]
        %v235 = vld [vmem:[%s192 + $0xb4] sm:$0xff]
        %v236 = vld [vmem:[%s192 + $0xbc] sm:$0xf]
        %v237 = vld [vmem:[%s192 + $0xc0] sm:$0xff]
        %v238 = vld [vmem:[%s192 + $0xc8] sm:$0xf]
        %v239 = vld [vmem:[%s192 + $0xcc] sm:$0xff]
        %v240 = vld [vmem:[%s192 + $0xd4] sm:$0xf]
        %v241 = vld [vmem:[%s192 + $0xd8] sm:$0xff]
        %v242 = vld [vmem:[%s192 + $0xe0] sm:$0xf]
        %v243 = vld [vmem:[%s192 + $0xe4] sm:$0xff]
        %v244 = vld [vmem:[%s192 + $0xec] sm:$0xf]
        %v245 = vld [vmem:[%s192 + $0xf0] sm:$0xff]
        %v246 = vld [vmem:[%s192 + $0xf8] sm:$0xf]
        %v247 = vld [vmem:[%s192 + $0xfc] sm:$0xff]
        %v248 = vld [vmem:[%s192 + $0x104] sm:$0xf]
        %v249 = vld [vmem:[%s192 + $0x108] sm:$0xff]
        %v250 = vld [vmem:[%s192 + $0x110] sm:$0xf]
        %v251 = vld [vmem:[%s192 + $0x114] sm:$0xff]
        %v252 = vld [vmem:[%s192 + $0x11c] sm:$0xf]
        %v253 = vld [vmem:[%s192 + $0x120] sm:$0xff]
        %v254 = vld [vmem:[%s192 + $0x128] sm:$0xf]
        %v255 = vld [vmem:[%s192 + $0x12c] sm:$0xff]
        %v256 = vld [vmem:[%s192 + $0x134] sm:$0xf]
        %v257 = vld [vmem:[%s192 + $0x138] sm:$0xff]
        %v258 = vld [vmem:[%s192 + $0x140] sm:$0xf]
        %v259 = vld [vmem:[%s192 + $0x144] sm:$0xff]
        %v260 = vld [vmem:[%s192 + $0x14c] sm:$0xf]
        %v261 = vld [vmem:[%s192 + $0x150] sm:$0xff]
        %v262 = vld [vmem:[%s192 + $0x158] sm:$0xf]
        %v263 = vld [vmem:[%s192 + $0x15c] sm:$0xff]
        %v264 = vld [vmem:[%s192 + $0x164] sm:$0xf]
        %v265 = vld [vmem:[%s192 + $0x168] sm:$0xff]
        %v266 = vld [vmem:[%s192 + $0x170] sm:$0xf]
        %v267 = vld [vmem:[%s192 + $0x174] sm:$0xff]
        %v268 = vld [vmem:[%s192 + $0x17c] sm:$0xf]
        %v269 = vld [vmem:[%s192 + $0x180] sm:$0xff]
        %v270 = vld [vmem:[%s192 + $0x188] sm:$0xf]
        %v271 = vld [vmem:[%s192 + $0x18c] sm:$0xff]
        %v272 = vld [vmem:[%s192 + $0x194] sm:$0xf]
        %v273 = vld [vmem:[%s192 + $0x198] sm:$0xff]
        %v274 = vld [vmem:[%s192 + $0x1a0] sm:$0xf]
        %v275 = vld [vmem:[%s192 + $0x1a4] sm:$0xff]
        %v276 = vld [vmem:[%s192 + $0x1ac] sm:$0xf]
        %v277 = vld [vmem:[%s192 + $0x1b0] sm:$0xff]
        %v278 = vld [vmem:[%s192 + $0x1b8] sm:$0xf]
        %v279 = vld [vmem:[%s192 + $0x1bc] sm:$0xff]
        %v280 = vld [vmem:[%s192 + $0x1c4] sm:$0xf]
        %v281 = vld [vmem:[%s192 + $0x1c8] sm:$0xff]
        %v282 = vld [vmem:[%s192 + $0x1d0] sm:$0xf]
        %v283 = vld [vmem:[%s192 + $0x1d4] sm:$0xff]
        %v284 = vld [vmem:[%s192 + $0x1dc] sm:$0xf]
        %v285 = vld [vmem:[%s192 + $0x1e0] sm:$0xff]
        %v286 = vld [vmem:[%s192 + $0x1e8] sm:$0xf]
        %v287 = vld [vmem:[%s192 + $0x1ec] sm:$0xff]
        %v288 = vld [vmem:[%s192 + $0x1f4] sm:$0xf]
        %v289 = vld [vmem:[%s192 + $0x1f8] sm:$0xff]
        %v290 = vld [vmem:[%s192 + $0x200] sm:$0xf]
        %v291 = vld [vmem:[%s192 + $0x204] sm:$0xff]
        %v292 = vld [vmem:[%s192 + $0x20c] sm:$0xf]
        %v293 = vld [vmem:[%s192 + $0x210] sm:$0xff]
        %v294 = vld [vmem:[%s192 + $0x218] sm:$0xf]
        %v295 = vld [vmem:[%s192 + $0x21c] sm:$0xff]
        %v296 = vld [vmem:[%s192 + $0x224] sm:$0xf]
        %v297 = vld [vmem:[%s192 + $0x228] sm:$0xff]
        %v298 = vld [vmem:[%s192 + $0x230] sm:$0xf]
        %v299 = vld [vmem:[%s192 + $0x234] sm:$0xff]
        %v300 = vld [vmem:[%s192 + $0x23c] sm:$0xf]
        %v301 = vld [vmem:[%s192 + $0x240] sm:$0xff]
        %v302 = vld [vmem:[%s192 + $0x248] sm:$0xf]
        %v303 = vld [vmem:[%s192 + $0x24c] sm:$0xff]
        %v304 = vld [vmem:[%s192 + $0x254] sm:$0xf]
        %v305 = vld [vmem:[%s192 + $0x258] sm:$0xff]
        %v306 = vld [vmem:[%s192 + $0x260] sm:$0xf]
        %v307 = vld [vmem:[%s192 + $0x264] sm:$0xff]
        %v308 = vld [vmem:[%s192 + $0x26c] sm:$0xf]
        %v309 = vld [vmem:[%s192 + $0x270] sm:$0xff]
        %v310 = vld [vmem:[%s192 + $0x278] sm:$0xf]
        %v311 = vld [vmem:[%s192 + $0x27c] sm:$0xff]
        %v312 = vld [vmem:[%s192 + $0x284] sm:$0xf]
        %v313 = vld [vmem:[%s192 + $0x288] sm:$0xff]
        %v314 = vld [vmem:[%s192 + $0x290] sm:$0xf]
        %v315 = vld [vmem:[%s192 + $0x294] sm:$0xff]
        %v316 = vld [vmem:[%s192 + $0x29c] sm:$0xf]
        %v317 = vld [vmem:[%s192 + $0x2a0] sm:$0xff]
        %v318 = vld [vmem:[%s192 + $0x2a8] sm:$0xf]
        %v319 = vld [vmem:[%s192 + $0x2ac] sm:$0xff]
        %v320 = vld [vmem:[%s192 + $0x2b4] sm:$0xf]
        %v321 = vld [vmem:[%s192 + $0x2b8] sm:$0xff]
        %v322 = vld [vmem:[%s192 + $0x2c0] sm:$0xf]
        %v323 = vld [vmem:[%s192 + $0x2c4] sm:$0xff]
        %v324 = vld [vmem:[%s192 + $0x2cc] sm:$0xf]
        %v325 = vld [vmem:[%s192 + $0x2d0] sm:$0xff]
        %v326 = vld [vmem:[%s192 + $0x2d8] sm:$0xf]
        %v327 = vld [vmem:[%s192 + $0x2dc] sm:$0xff]
        %v328 = vld [vmem:[%s192 + $0x2e4] sm:$0xf]
        %v329 = vld [vmem:[%s192 + $0x2e8] sm:$0xff]
        %v330 = vld [vmem:[%s192 + $0x2f0] sm:$0xf]
        %v331 = vld [vmem:[%s192 + $0x2f4] sm:$0xff]
        %v332 = vld [vmem:[%s192 + $0x2fc] sm:$0xf]
        %v333 = vld [vmem:[%s1] sm:$0xf]
        %v334 = vld [vmem:[%s1 + $0x4] sm:$0xf]
        %v335 = vld [vmem:[%s1 + $0x8] sm:$0xf]
        %v336 = vld [vmem:[%s1 + $0xc] sm:$0xf]
        %v337 = vld [vmem:[%s1 + $0x10] sm:$0xf]
        %v338 = vld [vmem:[%s1 + $0x14] sm:$0xf]
        %v339 = vld [vmem:[%s1 + $0x18] sm:$0xf]
        %v340 = vld [vmem:[%s1 + $0x1c] sm:$0xf]
        %v341 = vld [vmem:[%s1 + $0x20] sm:$0xf]
        %v342 = vld [vmem:[%s1 + $0x24] sm:$0xf]
        %v343 = vld [vmem:[%s1 + $0x28] sm:$0xf]
        %v344 = vld [vmem:[%s1 + $0x2c] sm:$0xf]
        %v345 = vld [vmem:[%s1 + $0x30] sm:$0xf]
        %v346 = vld [vmem:[%s1 + $0x34] sm:$0xf]
        %v347 = vld [vmem:[%s1 + $0x38] sm:$0xf]
        %v348 = vld [vmem:[%s1 + $0x3c] sm:$0xf]
        %v349 = vld [vmem:[%s1 + $0x40] sm:$0xf]
        %v350 = vld [vmem:[%s1 + $0x44] sm:$0xf]
        %v351 = vld [vmem:[%s1 + $0x48] sm:$0xf]
        %v352 = vld [vmem:[%s1 + $0x4c] sm:$0xf]
        %v353 = vld [vmem:[%s1 + $0x50] sm:$0xf]
        %v354 = vld [vmem:[%s1 + $0x54] sm:$0xf]
        %v355 = vld [vmem:[%s1 + $0x58] sm:$0xf]
        %v356 = vld [vmem:[%s1 + $0x5c] sm:$0xf]
        %v357 = vld [vmem:[%s1 + $0x60] sm:$0xf]
        %v358 = vld [vmem:[%s1 + $0x64] sm:$0xf]
        %v359 = vld [vmem:[%s1 + $0x68] sm:$0xf]
        %v360 = vld [vmem:[%s1 + $0x6c] sm:$0xf]
        %v361 = vld [vmem:[%s1 + $0x70] sm:$0xf]
        %v362 = vld [vmem:[%s1 + $0x74] sm:$0xf]
        %v363 = vld [vmem:[%s1 + $0x78] sm:$0xf]
        %v364 = vld [vmem:[%s1 + $0x7c] sm:$0xf]
        %v365 = vld [vmem:[%s1 + $0x80] sm:$0xf]
        %v366 = vld [vmem:[%s1 + $0x84] sm:$0xf]
        %v367 = vld [vmem:[%s1 + $0x88] sm:$0xf]
        %v368 = vld [vmem:[%s1 + $0x8c] sm:$0xf]
        %v369 = vld [vmem:[%s2] sm:$0x1]
        %v371 = vlaneseq
        %v372 = vshrl.u32 %v371, 7
        %v373 = vsub.s32 0, %v372
        %v374 = vrot.slane %v369, %v373
        %v504 = vunpack.c.l.b16 %v205
        %v505 = vunpack.c.h.b16 %v205
        %v506 = vunpack.c.l.b16 %v206
        %v507 = vunpack.c.l.b16 %v207
        %v508 = vunpack.c.h.b16 %v207
        %v509 = vunpack.c.l.b16 %v208
        %v510 = vunpack.c.l.b16 %v209
        %v511 = vunpack.c.h.b16 %v209
        %v512 = vunpack.c.l.b16 %v210
        %v513 = vunpack.c.l.b16 %v211
        %v514 = vunpack.c.h.b16 %v211
        %v515 = vunpack.c.l.b16 %v212
        %v516 = vunpack.c.l.b16 %v213
        %v517 = vunpack.c.h.b16 %v213
        %v518 = vunpack.c.l.b16 %v214
        %v519 = vunpack.c.l.b16 %v215
        %v520 = vunpack.c.h.b16 %v215
        %v521 = vunpack.c.l.b16 %v216
        %v522 = vunpack.c.l.b16 %v217
        %v523 = vunpack.c.h.b16 %v217
        %v524 = vunpack.c.l.b16 %v218
        %v525 = vunpack.c.l.b16 %v219
        %v526 = vunpack.c.h.b16 %v219
        %v527 = vunpack.c.l.b16 %v220
        %v528 = vunpack.c.l.b16 %v221
        %v529 = vunpack.c.h.b16 %v221
        %v530 = vunpack.c.l.b16 %v222
        %v531 = vunpack.c.l.b16 %v223
        %v532 = vunpack.c.h.b16 %v223
        %v533 = vunpack.c.l.b16 %v224
        %v534 = vunpack.c.l.b16 %v225
        %v535 = vunpack.c.h.b16 %v225
        %v536 = vunpack.c.l.b16 %v226
        %v537 = vunpack.c.l.b16 %v227
        %v538 = vunpack.c.h.b16 %v227
        %v539 = vunpack.c.l.b16 %v228
        %v540 = vunpack.c.l.b16 %v229
        %v541 = vunpack.c.h.b16 %v229
        %v542 = vunpack.c.l.b16 %v230
        %v543 = vunpack.c.l.b16 %v231
        %v544 = vunpack.c.h.b16 %v231
        %v545 = vunpack.c.l.b16 %v232
        %v546 = vunpack.c.l.b16 %v233
        %v547 = vunpack.c.h.b16 %v233
        %v548 = vunpack.c.l.b16 %v234
        %v549 = vunpack.c.l.b16 %v235
        %v550 = vunpack.c.h.b16 %v235
        %v551 = vunpack.c.l.b16 %v236
        %v552 = vunpack.c.l.b16 %v237
        %v553 = vunpack.c.h.b16 %v237
        %v554 = vunpack.c.l.b16 %v238
        %v555 = vunpack.c.l.b16 %v239
        %v556 = vunpack.c.h.b16 %v239
        %v557 = vunpack.c.l.b16 %v240
        %v558 = vunpack.c.l.b16 %v241
        %v559 = vunpack.c.h.b16 %v241
        %v560 = vunpack.c.l.b16 %v242
        %v561 = vunpack.c.l.b16 %v243
        %v562 = vunpack.c.h.b16 %v243
        %v563 = vunpack.c.l.b16 %v244
        %v564 = vunpack.c.l.b16 %v245
        %v565 = vunpack.c.h.b16 %v245
        %v566 = vunpack.c.l.b16 %v246
        %v567 = vunpack.c.l.b16 %v247
        %v568 = vunpack.c.h.b16 %v247
        %v569 = vunpack.c.l.b16 %v248
        %v570 = vunpack.c.l.b16 %v249
        %v571 = vunpack.c.h.b16 %v249
        %v572 = vunpack.c.l.b16 %v250
        %v573 = vunpack.c.l.b16 %v251
        %v574 = vunpack.c.h.b16 %v251
        %v575 = vunpack.c.l.b16 %v252
        %v576 = vunpack.c.l.b16 %v253
        %v577 = vunpack.c.h.b16 %v253
        %v578 = vunpack.c.l.b16 %v254
        %v579 = vunpack.c.l.b16 %v255
        %v580 = vunpack.c.h.b16 %v255
        %v581 = vunpack.c.l.b16 %v256
        %v582 = vunpack.c.l.b16 %v257
        %v583 = vunpack.c.h.b16 %v257
        %v584 = vunpack.c.l.b16 %v258
        %v585 = vunpack.c.l.b16 %v259
        %v586 = vunpack.c.h.b16 %v259
        %v587 = vunpack.c.l.b16 %v260
        %v588 = vunpack.c.l.b16 %v261
        %v589 = vunpack.c.h.b16 %v261
        %v590 = vunpack.c.l.b16 %v262
        %v591 = vunpack.c.l.b16 %v263
        %v592 = vunpack.c.h.b16 %v263
        %v593 = vunpack.c.l.b16 %v264
        %v594 = vunpack.c.l.b16 %v265
        %v595 = vunpack.c.h.b16 %v265
        %v596 = vunpack.c.l.b16 %v266
        %v597 = vunpack.c.l.b16 %v267
        %v598 = vunpack.c.h.b16 %v267
        %v599 = vunpack.c.l.b16 %v268
        %v600 = vunpack.c.l.b16 %v269
        %v601 = vunpack.c.h.b16 %v269
        %v602 = vunpack.c.l.b16 %v270
        %v603 = vunpack.c.l.b16 %v271
        %v604 = vunpack.c.h.b16 %v271
        %v605 = vunpack.c.l.b16 %v272
        %v606 = vunpack.c.l.b16 %v273
        %v607 = vunpack.c.h.b16 %v273
        %v608 = vunpack.c.l.b16 %v274
        %v609 = vunpack.c.l.b16 %v275
        %v610 = vunpack.c.h.b16 %v275
        %v611 = vunpack.c.l.b16 %v276
        %v612 = vunpack.c.l.b16 %v277
        %v613 = vunpack.c.h.b16 %v277
        %v614 = vunpack.c.l.b16 %v278
        %v615 = vunpack.c.l.b16 %v279
        %v616 = vunpack.c.h.b16 %v279
        %v617 = vunpack.c.l.b16 %v280
        %v618 = vunpack.c.l.b16 %v281
        %v619 = vunpack.c.h.b16 %v281
        %v620 = vunpack.c.l.b16 %v282
        %v621 = vunpack.c.l.b16 %v283
        %v622 = vunpack.c.h.b16 %v283
        %v623 = vunpack.c.l.b16 %v284
        %v624 = vunpack.c.l.b16 %v285
        %v625 = vunpack.c.h.b16 %v285
        %v626 = vunpack.c.l.b16 %v286
        %v627 = vunpack.c.l.b16 %v287
        %v628 = vunpack.c.h.b16 %v287
        %v629 = vunpack.c.l.b16 %v288
        %v630 = vunpack.c.l.b16 %v289
        %v631 = vunpack.c.h.b16 %v289
        %v632 = vunpack.c.l.b16 %v290
        %v633 = vunpack.c.l.b16 %v291
        %v634 = vunpack.c.h.b16 %v291
        %v635 = vunpack.c.l.b16 %v292
        %v636 = vunpack.c.l.b16 %v293
        %v637 = vunpack.c.h.b16 %v293
        %v638 = vunpack.c.l.b16 %v294
        %v639 = vunpack.c.l.b16 %v295
        %v640 = vunpack.c.h.b16 %v295
        %v641 = vunpack.c.l.b16 %v296
        %v642 = vunpack.c.l.b16 %v297
        %v643 = vunpack.c.h.b16 %v297
        %v644 = vunpack.c.l.b16 %v298
        %v645 = vunpack.c.l.b16 %v299
        %v646 = vunpack.c.h.b16 %v299
        %v647 = vunpack.c.l.b16 %v300
        %v648 = vunpack.c.l.b16 %v301
        %v649 = vunpack.c.h.b16 %v301
        %v650 = vunpack.c.l.b16 %v302
        %v651 = vunpack.c.l.b16 %v303
        %v652 = vunpack.c.h.b16 %v303
        %v653 = vunpack.c.l.b16 %v304
        %v654 = vunpack.c.l.b16 %v305
        %v655 = vunpack.c.h.b16 %v305
        %v656 = vunpack.c.l.b16 %v306
        %v657 = vunpack.c.l.b16 %v307
        %v658 = vunpack.c.h.b16 %v307
        %v659 = vunpack.c.l.b16 %v308
        %v660 = vunpack.c.l.b16 %v309
        %v661 = vunpack.c.h.b16 %v309
        %v662 = vunpack.c.l.b16 %v310
        %v663 = vunpack.c.l.b16 %v311
        %v664 = vunpack.c.h.b16 %v311
        %v665 = vunpack.c.l.b16 %v312
        %v666 = vunpack.c.l.b16 %v313
        %v667 = vunpack.c.h.b16 %v313
        %v668 = vunpack.c.l.b16 %v314
        %v669 = vunpack.c.l.b16 %v315
        %v670 = vunpack.c.h.b16 %v315
        %v671 = vunpack.c.l.b16 %v316
        %v672 = vunpack.c.l.b16 %v317
        %v673 = vunpack.c.h.b16 %v317
        %v674 = vunpack.c.l.b16 %v318
        %v675 = vunpack.c.l.b16 %v319
        %v676 = vunpack.c.h.b16 %v319
        %v677 = vunpack.c.l.b16 %v320
        %v678 = vunpack.c.l.b16 %v321
        %v679 = vunpack.c.h.b16 %v321
        %v680 = vunpack.c.l.b16 %v322
        %v681 = vunpack.c.l.b16 %v323
        %v682 = vunpack.c.h.b16 %v323
        %v683 = vunpack.c.l.b16 %v324
        %v684 = vunpack.c.l.b16 %v325
        %v685 = vunpack.c.h.b16 %v325
        %v686 = vunpack.c.l.b16 %v326
        %v687 = vunpack.c.l.b16 %v327
        %v688 = vunpack.c.h.b16 %v327
        %v689 = vunpack.c.l.b16 %v328
        %v690 = vunpack.c.l.b16 %v329
        %v691 = vunpack.c.h.b16 %v329
        %v692 = vunpack.c.l.b16 %v330
        %v693 = vunpack.c.l.b16 %v331
        %v694 = vunpack.c.h.b16 %v331
        %v695 = vunpack.c.l.b16 %v332
        %v696 = vpack.c.b16 %v507, %v504
        %v697 = vpack.c.b16 %v508, %v505
        %v698 = vpack.c.b16 %v509, %v506
        %v699 = vpack.c.b16 %v513, %v510
        %v700 = vpack.c.b16 %v514, %v511
        %v701 = vpack.c.b16 %v515, %v512
        %v702 = vpack.c.b16 %v519, %v516
        %v703 = vpack.c.b16 %v520, %v517
        %v704 = vpack.c.b16 %v521, %v518
        %v705 = vpack.c.b16 %v525, %v522
        %v706 = vpack.c.b16 %v526, %v523
        %v707 = vpack.c.b16 %v527, %v524
        %v708 = vpack.c.b16 %v531, %v528
        %v709 = vpack.c.b16 %v532, %v529
        %v710 = vpack.c.b16 %v533, %v530
        %v711 = vpack.c.b16 %v537, %v534
        %v712 = vpack.c.b16 %v538, %v535
        %v713 = vpack.c.b16 %v539, %v536
        %v714 = vpack.c.b16 %v543, %v540
        %v715 = vpack.c.b16 %v544, %v541
        %v716 = vpack.c.b16 %v545, %v542
        %v717 = vpack.c.b16 %v549, %v546
        %v718 = vpack.c.b16 %v550, %v547
        %v719 = vpack.c.b16 %v551, %v548
        %v720 = vpack.c.b16 %v555, %v552
        %v721 = vpack.c.b16 %v556, %v553
        %v722 = vpack.c.b16 %v557, %v554
        %v723 = vpack.c.b16 %v561, %v558
        %v724 = vpack.c.b16 %v562, %v559
        %v725 = vpack.c.b16 %v563, %v560
        %v726 = vpack.c.b16 %v567, %v564
        %v727 = vpack.c.b16 %v568, %v565
        %v728 = vpack.c.b16 %v569, %v566
        %v729 = vpack.c.b16 %v573, %v570
        %v730 = vpack.c.b16 %v574, %v571
        %v731 = vpack.c.b16 %v575, %v572
        %v732 = vpack.c.b16 %v579, %v576
        %v733 = vpack.c.b16 %v580, %v577
        %v734 = vpack.c.b16 %v581, %v578
        %v735 = vpack.c.b16 %v585, %v582
        %v736 = vpack.c.b16 %v586, %v583
        %v737 = vpack.c.b16 %v587, %v584
        %v738 = vpack.c.b16 %v591, %v588
        %v739 = vpack.c.b16 %v592, %v589
        %v740 = vpack.c.b16 %v593, %v590
        %v741 = vpack.c.b16 %v597, %v594
        %v742 = vpack.c.b16 %v598, %v595
        %v743 = vpack.c.b16 %v599, %v596
        %v744 = vpack.c.b16 %v603, %v600
        %v745 = vpack.c.b16 %v604, %v601
        %v746 = vpack.c.b16 %v605, %v602
        %v747 = vpack.c.b16 %v609, %v606
        %v748 = vpack.c.b16 %v610, %v607
        %v749 = vpack.c.b16 %v611, %v608
        %v750 = vpack.c.b16 %v615, %v612
        %v751 = vpack.c.b16 %v616, %v613
        %v752 = vpack.c.b16 %v617, %v614
        %v753 = vpack.c.b16 %v621, %v618
        %v754 = vpack.c.b16 %v622, %v619
        %v755 = vpack.c.b16 %v623, %v620
        %v756 = vpack.c.b16 %v627, %v624
        %v757 = vpack.c.b16 %v628, %v625
        %v758 = vpack.c.b16 %v629, %v626
        %v759 = vpack.c.b16 %v633, %v630
        %v760 = vpack.c.b16 %v634, %v631
        %v761 = vpack.c.b16 %v635, %v632
        %v762 = vpack.c.b16 %v639, %v636
        %v763 = vpack.c.b16 %v640, %v637
        %v764 = vpack.c.b16 %v641, %v638
        %v765 = vpack.c.b16 %v645, %v642
        %v766 = vpack.c.b16 %v646, %v643
        %v767 = vpack.c.b16 %v647, %v644
        %v768 = vpack.c.b16 %v651, %v648
        %v769 = vpack.c.b16 %v652, %v649
        %v770 = vpack.c.b16 %v653, %v650
        %v771 = vpack.c.b16 %v657, %v654
        %v772 = vpack.c.b16 %v658, %v655
        %v773 = vpack.c.b16 %v659, %v656
        %v774 = vpack.c.b16 %v663, %v660
        %v775 = vpack.c.b16 %v664, %v661
        %v776 = vpack.c.b16 %v665, %v662
        %v777 = vpack.c.b16 %v669, %v666
        %v778 = vpack.c.b16 %v670, %v667
        %v779 = vpack.c.b16 %v671, %v668
        %v780 = vpack.c.b16 %v675, %v672
        %v781 = vpack.c.b16 %v676, %v673
        %v782 = vpack.c.b16 %v677, %v674
        %v783 = vpack.c.b16 %v681, %v678
        %v784 = vpack.c.b16 %v682, %v679
        %v785 = vpack.c.b16 %v683, %v680
        %v786 = vpack.c.b16 %v687, %v684
        %v787 = vpack.c.b16 %v688, %v685
        %v788 = vpack.c.b16 %v689, %v686
        %v789 = vpack.c.b16 %v693, %v690
        %v790 = vpack.c.b16 %v694, %v691
        %v791 = vpack.c.b16 %v695, %v692
        %v892 = vunpack.c.l.b16 %v333
        %v893 = vunpack.c.l.b16 %v334
        %v894 = vunpack.c.l.b16 %v335
        %v895 = vunpack.c.l.b16 %v336
        %v896 = vunpack.c.l.b16 %v337
        %v897 = vunpack.c.l.b16 %v338
        %v898 = vunpack.c.l.b16 %v339
        %v899 = vunpack.c.l.b16 %v340
        %v900 = vunpack.c.l.b16 %v341
        %v901 = vunpack.c.l.b16 %v342
        %v902 = vunpack.c.l.b16 %v343
        %v903 = vunpack.c.l.b16 %v344
        %v904 = vunpack.c.l.b16 %v345
        %v905 = vunpack.c.l.b16 %v346
        %v906 = vunpack.c.l.b16 %v347
        %v907 = vunpack.c.l.b16 %v348
        %v908 = vunpack.c.l.b16 %v349
        %v909 = vunpack.c.l.b16 %v350
        %v910 = vunpack.c.l.b16 %v351
        %v911 = vunpack.c.l.b16 %v352
        %v912 = vunpack.c.l.b16 %v353
        %v913 = vunpack.c.l.b16 %v354
        %v914 = vunpack.c.l.b16 %v355
        %v915 = vunpack.c.l.b16 %v356
        %v916 = vunpack.c.l.b16 %v357
        %v917 = vunpack.c.l.b16 %v358
        %v918 = vunpack.c.l.b16 %v359
        %v919 = vunpack.c.l.b16 %v360
        %v920 = vunpack.c.l.b16 %v361
        %v921 = vunpack.c.l.b16 %v362
        %v922 = vunpack.c.l.b16 %v363
        %v923 = vunpack.c.l.b16 %v364
        %v924 = vunpack.c.l.b16 %v365
        %v925 = vunpack.c.l.b16 %v366
        %v926 = vunpack.c.l.b16 %v367
        %v927 = vunpack.c.l.b16 %v368
        %v928 = vpack.c.b16 %v893, %v892
        %v929 = vpack.c.b16 %v895, %v894
        %v930 = vpack.c.b16 %v897, %v896
        %v931 = vpack.c.b16 %v899, %v898
        %v932 = vpack.c.b16 %v901, %v900
        %v933 = vpack.c.b16 %v903, %v902
        %v934 = vpack.c.b16 %v905, %v904
        %v935 = vpack.c.b16 %v907, %v906
        %v936 = vpack.c.b16 %v909, %v908
        %v937 = vpack.c.b16 %v911, %v910
        %v938 = vpack.c.b16 %v913, %v912
        %v939 = vpack.c.b16 %v915, %v914
        %v940 = vpack.c.b16 %v917, %v916
        %v941 = vpack.c.b16 %v919, %v918
        %v942 = vpack.c.b16 %v921, %v920
        %v943 = vpack.c.b16 %v923, %v922
        %v944 = vpack.c.b16 %v925, %v924
        %v945 = vpack.c.b16 %v927, %v926
        %vm964 = vcmask 261120
        %v966 = vsel %vm964, %v698, 0
        %v969 = vsel %vm964, %v701, 0
        %v972 = vsel %vm964, %v704, 0
        %v975 = vsel %vm964, %v707, 0
        %v978 = vsel %vm964, %v710, 0
        %v981 = vsel %vm964, %v713, 0
        %v984 = vsel %vm964, %v716, 0
        %v987 = vsel %vm964, %v719, 0
        %v990 = vsel %vm964, %v722, 0
        %v993 = vsel %vm964, %v725, 0
        %v996 = vsel %vm964, %v728, 0
        %v999 = vsel %vm964, %v731, 0
        %v1002 = vsel %vm964, %v734, 0
        %v1005 = vsel %vm964, %v737, 0
        %v1008 = vsel %vm964, %v740, 0
        %v1011 = vsel %vm964, %v743, 0
        %v1014 = vsel %vm964, %v746, 0
        %v1017 = vsel %vm964, %v749, 0
        %v1020 = vsel %vm964, %v752, 0
        %v1023 = vsel %vm964, %v755, 0
        %v1026 = vsel %vm964, %v758, 0
        %v1029 = vsel %vm964, %v761, 0
        %v1032 = vsel %vm964, %v764, 0
        %v1035 = vsel %vm964, %v767, 0
        %v1038 = vsel %vm964, %v770, 0
        %v1041 = vsel %vm964, %v773, 0
        %v1044 = vsel %vm964, %v776, 0
        %v1047 = vsel %vm964, %v779, 0
        %v1050 = vsel %vm964, %v782, 0
        %v1053 = vsel %vm964, %v785, 0
        %v1056 = vsel %vm964, %v788, 0
        %v1059 = vsel %vm964, %v791, 0
        %1061 = vmatprep.subr.bf16.mxu0 0
        %1062 = vmatpush1.bf16.msra.mxu0 %v935
        %1063 = vmatprep.subr.bf16.mxu0 0
        %1064 = vmatpush1.bf16.msra.mxu0 %v934
        %1065 = vmatprep.subr.bf16.mxu0 0
        %1066 = vmatpush1.bf16.msra.mxu0 %v933
        %1067 = vmatprep.subr.bf16.mxu0 0
        %1068 = vmatpush1.bf16.msra.mxu0 %v932
        %1069 = vmatprep.subr.bf16.mxu0 0
        %1070 = vmatpush1.bf16.msra.mxu0 %v931
        %1071 = vmatprep.subr.bf16.mxu0 0
        %1072 = vmatpush1.bf16.msra.mxu0 %v930
        %1073 = vmatprep.subr.bf16.mxu0 0
        %1074 = vmatpush1.bf16.msra.mxu0 %v929
        %1075 = vmatprep.subr.bf16.mxu0 0
        %1076 = vmatpush1.bf16.msra.mxu0 %v928
        %1077 = vmatprep.subr.bf16.mxu0 0
        %1078 = vmatpush2.bf16.msra.mxu0 %v943
        %1079 = vmatprep.subr.bf16.mxu0 0
        %1080 = vmatpush2.bf16.msra.mxu0 %v942
        %1081 = vmatprep.subr.bf16.mxu0 0
        %1082 = vmatpush2.bf16.msra.mxu0 %v941
        %1083 = vmatprep.subr.bf16.mxu0 0
        %1084 = vmatpush2.bf16.msra.mxu0 %v940
        %1085 = vmatprep.subr.bf16.mxu0 0
        %1086 = vmatpush2.bf16.msra.mxu0 %v939
        %1087 = vmatprep.subr.bf16.mxu0 0
        %1088 = vmatpush2.bf16.msra.mxu0 %v938
        %1089 = vmatprep.subr.bf16.mxu0 0
        %1090 = vmatpush2.bf16.msra.mxu0 %v937
        %1091 = vmatprep.subr.bf16.mxu0 0
        %1092 = vmatpush2.bf16.msra.mxu0 %v936
        %1093 = vmatprep.mubr.bf16.mxu0 %v697
        %1094 = vmatmul.mubr.bf16.gmra.mxu0 %v696
        %v1095 = vpop.f32.mrf.mxu0
        %v1096 = vadd.f32 %v374, %v1095
        %v1097 = vpop.f32.mrf.mxu0
        %v1098 = vpop.f32.mrf.mxu0
        %v1099 = vadd.f32 %v374, %v1098
        %v1100 = vpop.f32.mrf.mxu0
        %1101 = vmatprep.mubr.bf16.mxu0 %v700
        %1102 = vmatmul.mubr.bf16.gmra.mxu0 %v699
        %v1103 = vpop.f32.mrf.mxu0
        %v1104 = vadd.f32 %v374, %v1103
        %v1105 = vpop.f32.mrf.mxu0
        %v1106 = vpop.f32.mrf.mxu0
        %v1107 = vadd.f32 %v374, %v1106
        %v1108 = vpop.f32.mrf.mxu0
        %1109 = vmatprep.mubr.bf16.mxu0 %v703
        %1110 = vmatmul.mubr.bf16.gmra.mxu0 %v702
        %v1111 = vpop.f32.mrf.mxu0
        %v1112 = vadd.f32 %v374, %v1111
        %v1113 = vpop.f32.mrf.mxu0
        %v1114 = vpop.f32.mrf.mxu0
        %v1115 = vadd.f32 %v374, %v1114
        %v1116 = vpop.f32.mrf.mxu0
        %1117 = vmatprep.mubr.bf16.mxu0 %v706
        %1118 = vmatmul.mubr.bf16.gmra.mxu0 %v705
        %v1119 = vpop.f32.mrf.mxu0
        %v1120 = vadd.f32 %v374, %v1119
        %v1121 = vpop.f32.mrf.mxu0
        %v1122 = vpop.f32.mrf.mxu0
        %v1123 = vadd.f32 %v374, %v1122
        %v1124 = vpop.f32.mrf.mxu0
        %1125 = vmatprep.mubr.bf16.mxu0 %v709
        %1126 = vmatmul.mubr.bf16.gmra.mxu0 %v708
        %v1127 = vpop.f32.mrf.mxu0
        %v1128 = vadd.f32 %v374, %v1127
        %v1129 = vpop.f32.mrf.mxu0
        %v1130 = vpop.f32.mrf.mxu0
        %v1131 = vadd.f32 %v374, %v1130
        %v1132 = vpop.f32.mrf.mxu0
        %1133 = vmatprep.mubr.bf16.mxu0 %v712
        %1134 = vmatmul.mubr.bf16.gmra.mxu0 %v711
        %v1135 = vpop.f32.mrf.mxu0
        %v1136 = vadd.f32 %v374, %v1135
        %v1137 = vpop.f32.mrf.mxu0
        %v1138 = vpop.f32.mrf.mxu0
        %v1139 = vadd.f32 %v374, %v1138
        %v1140 = vpop.f32.mrf.mxu0
        %1141 = vmatprep.mubr.bf16.mxu0 %v715
        %1142 = vmatmul.mubr.bf16.gmra.mxu0 %v714
        %v1143 = vpop.f32.mrf.mxu0
        %v1144 = vadd.f32 %v374, %v1143
        %v1145 = vpop.f32.mrf.mxu0
        %v1146 = vpop.f32.mrf.mxu0
        %v1147 = vadd.f32 %v374, %v1146
        %v1148 = vpop.f32.mrf.mxu0
        %1149 = vmatprep.mubr.bf16.mxu0 %v718
        %1150 = vmatmul.mubr.bf16.gmra.mxu0 %v717
        %v1151 = vpop.f32.mrf.mxu0
        %v1152 = vadd.f32 %v374, %v1151
        %v1153 = vpop.f32.mrf.mxu0
        %v1154 = vpop.f32.mrf.mxu0
        %v1155 = vadd.f32 %v374, %v1154
        %v1156 = vpop.f32.mrf.mxu0
        %1157 = vmatprep.mubr.bf16.mxu0 %v721
        %1158 = vmatmul.mubr.bf16.gmra.mxu0 %v720
        %v1159 = vpop.f32.mrf.mxu0
        %v1160 = vadd.f32 %v374, %v1159
        %v1161 = vpop.f32.mrf.mxu0
        %v1162 = vpop.f32.mrf.mxu0
        %v1163 = vadd.f32 %v374, %v1162
        %v1164 = vpop.f32.mrf.mxu0
        %1165 = vmatprep.mubr.bf16.mxu0 %v724
        %1166 = vmatmul.mubr.bf16.gmra.mxu0 %v723
        %v1167 = vpop.f32.mrf.mxu0
        %v1168 = vadd.f32 %v374, %v1167
        %v1169 = vpop.f32.mrf.mxu0
        %v1170 = vpop.f32.mrf.mxu0
        %v1171 = vadd.f32 %v374, %v1170
        %v1172 = vpop.f32.mrf.mxu0
        %1173 = vmatprep.mubr.bf16.mxu0 %v727
        %1174 = vmatmul.mubr.bf16.gmra.mxu0 %v726
        %v1175 = vpop.f32.mrf.mxu0
        %v1176 = vadd.f32 %v374, %v1175
        %v1177 = vpop.f32.mrf.mxu0
        %v1178 = vpop.f32.mrf.mxu0
        %v1179 = vadd.f32 %v374, %v1178
        %v1180 = vpop.f32.mrf.mxu0
        %1181 = vmatprep.mubr.bf16.mxu0 %v730
        %1182 = vmatmul.mubr.bf16.gmra.mxu0 %v729
        %v1183 = vpop.f32.mrf.mxu0
        %v1184 = vadd.f32 %v374, %v1183
        %v1185 = vpop.f32.mrf.mxu0
        %v1186 = vpop.f32.mrf.mxu0
        %v1187 = vadd.f32 %v374, %v1186
        %v1188 = vpop.f32.mrf.mxu0
        %1189 = vmatprep.mubr.bf16.mxu0 %v733
        %1190 = vmatmul.mubr.bf16.gmra.mxu0 %v732
        %v1191 = vpop.f32.mrf.mxu0
        %v1192 = vadd.f32 %v374, %v1191
        %v1193 = vpop.f32.mrf.mxu0
        %v1194 = vpop.f32.mrf.mxu0
        %v1195 = vadd.f32 %v374, %v1194
        %v1196 = vpop.f32.mrf.mxu0
        %1197 = vmatprep.mubr.bf16.mxu0 %v736
        %1198 = vmatmul.mubr.bf16.gmra.mxu0 %v735
        %v1199 = vpop.f32.mrf.mxu0
        %v1200 = vadd.f32 %v374, %v1199
        %v1201 = vpop.f32.mrf.mxu0
        %v1202 = vpop.f32.mrf.mxu0
        %v1203 = vadd.f32 %v374, %v1202
        %v1204 = vpop.f32.mrf.mxu0
        %1205 = vmatprep.mubr.bf16.mxu0 %v739
        %1206 = vmatmul.mubr.bf16.gmra.mxu0 %v738
        %v1207 = vpop.f32.mrf.mxu0
        %v1208 = vadd.f32 %v374, %v1207
        %v1209 = vpop.f32.mrf.mxu0
        %v1210 = vpop.f32.mrf.mxu0
        %v1211 = vadd.f32 %v374, %v1210
        %v1212 = vpop.f32.mrf.mxu0
        %1213 = vmatprep.mubr.bf16.mxu0 %v742
        %1214 = vmatmul.mubr.bf16.gmra.mxu0 %v741
        %v1215 = vpop.f32.mrf.mxu0
        %v1216 = vadd.f32 %v374, %v1215
        %v1217 = vpop.f32.mrf.mxu0
        %v1218 = vpop.f32.mrf.mxu0
        %v1219 = vadd.f32 %v374, %v1218
        %v1220 = vpop.f32.mrf.mxu0
        %1221 = vmatprep.mubr.bf16.mxu0 %v745
        %1222 = vmatmul.mubr.bf16.gmra.mxu0 %v744
        %v1223 = vpop.f32.mrf.mxu0
        %v1224 = vadd.f32 %v374, %v1223
        %v1225 = vpop.f32.mrf.mxu0
        %v1226 = vpop.f32.mrf.mxu0
        %v1227 = vadd.f32 %v374, %v1226
        %v1228 = vpop.f32.mrf.mxu0
        %1229 = vmatprep.mubr.bf16.mxu0 %v748
        %1230 = vmatmul.mubr.bf16.gmra.mxu0 %v747
        %v1231 = vpop.f32.mrf.mxu0
        %v1232 = vadd.f32 %v374, %v1231
        %v1233 = vpop.f32.mrf.mxu0
        %v1234 = vpop.f32.mrf.mxu0
        %v1235 = vadd.f32 %v374, %v1234
        %v1236 = vpop.f32.mrf.mxu0
        %1237 = vmatprep.mubr.bf16.mxu0 %v751
        %1238 = vmatmul.mubr.bf16.gmra.mxu0 %v750
        %v1239 = vpop.f32.mrf.mxu0
        %v1240 = vadd.f32 %v374, %v1239
        %v1241 = vpop.f32.mrf.mxu0
        %v1242 = vpop.f32.mrf.mxu0
        %v1243 = vadd.f32 %v374, %v1242
        %v1244 = vpop.f32.mrf.mxu0
        %1245 = vmatprep.mubr.bf16.mxu0 %v754
        %1246 = vmatmul.mubr.bf16.gmra.mxu0 %v753
        %v1247 = vpop.f32.mrf.mxu0
        %v1248 = vadd.f32 %v374, %v1247
        %v1249 = vpop.f32.mrf.mxu0
        %v1250 = vpop.f32.mrf.mxu0
        %v1251 = vadd.f32 %v374, %v1250
        %v1252 = vpop.f32.mrf.mxu0
        %1253 = vmatprep.mubr.bf16.mxu0 %v757
        %1254 = vmatmul.mubr.bf16.gmra.mxu0 %v756
        %v1255 = vpop.f32.mrf.mxu0
        %v1256 = vadd.f32 %v374, %v1255
        %v1257 = vpop.f32.mrf.mxu0
        %v1258 = vpop.f32.mrf.mxu0
        %v1259 = vadd.f32 %v374, %v1258
        %v1260 = vpop.f32.mrf.mxu0
        %1261 = vmatprep.mubr.bf16.mxu0 %v760
        %1262 = vmatmul.mubr.bf16.gmra.mxu0 %v759
        %v1263 = vpop.f32.mrf.mxu0
        %v1264 = vadd.f32 %v374, %v1263
        %v1265 = vpop.f32.mrf.mxu0
        %v1266 = vpop.f32.mrf.mxu0
        %v1267 = vadd.f32 %v374, %v1266
        %v1268 = vpop.f32.mrf.mxu0
        %1269 = vmatprep.mubr.bf16.mxu0 %v763
        %1270 = vmatmul.mubr.bf16.gmra.mxu0 %v762
        %v1271 = vpop.f32.mrf.mxu0
        %v1272 = vadd.f32 %v374, %v1271
        %v1273 = vpop.f32.mrf.mxu0
        %v1274 = vpop.f32.mrf.mxu0
        %v1275 = vadd.f32 %v374, %v1274
        %v1276 = vpop.f32.mrf.mxu0
        %1277 = vmatprep.mubr.bf16.mxu0 %v766
        %1278 = vmatmul.mubr.bf16.gmra.mxu0 %v765
        %v1279 = vpop.f32.mrf.mxu0
        %v1280 = vadd.f32 %v374, %v1279
        %v1281 = vpop.f32.mrf.mxu0
        %v1282 = vpop.f32.mrf.mxu0
        %v1283 = vadd.f32 %v374, %v1282
        %v1284 = vpop.f32.mrf.mxu0
        %1285 = vmatprep.mubr.bf16.mxu0 %v769
        %1286 = vmatmul.mubr.bf16.gmra.mxu0 %v768
        %v1287 = vpop.f32.mrf.mxu0
        %v1288 = vadd.f32 %v374, %v1287
        %v1289 = vpop.f32.mrf.mxu0
        %v1290 = vpop.f32.mrf.mxu0
        %v1291 = vadd.f32 %v374, %v1290
        %v1292 = vpop.f32.mrf.mxu0
        %1293 = vmatprep.mubr.bf16.mxu0 %v772
        %1294 = vmatmul.mubr.bf16.gmra.mxu0 %v771
        %v1295 = vpop.f32.mrf.mxu0
        %v1296 = vadd.f32 %v374, %v1295
        %v1297 = vpop.f32.mrf.mxu0
        %v1298 = vpop.f32.mrf.mxu0
        %v1299 = vadd.f32 %v374, %v1298
        %v1300 = vpop.f32.mrf.mxu0
        %1301 = vmatprep.mubr.bf16.mxu0 %v775
        %1302 = vmatmul.mubr.bf16.gmra.mxu0 %v774
        %v1303 = vpop.f32.mrf.mxu0
        %v1304 = vadd.f32 %v374, %v1303
        %v1305 = vpop.f32.mrf.mxu0
        %v1306 = vpop.f32.mrf.mxu0
        %v1307 = vadd.f32 %v374, %v1306
        %v1308 = vpop.f32.mrf.mxu0
        %1309 = vmatprep.mubr.bf16.mxu0 %v778
        %1310 = vmatmul.mubr.bf16.gmra.mxu0 %v777
        %v1311 = vpop.f32.mrf.mxu0
        %v1312 = vadd.f32 %v374, %v1311
        %v1313 = vpop.f32.mrf.mxu0
        %v1314 = vpop.f32.mrf.mxu0
        %v1315 = vadd.f32 %v374, %v1314
        %v1316 = vpop.f32.mrf.mxu0
        %1317 = vmatprep.mubr.bf16.mxu0 %v781
        %1318 = vmatmul.mubr.bf16.gmra.mxu0 %v780
        %v1319 = vpop.f32.mrf.mxu0
        %v1320 = vadd.f32 %v374, %v1319
        %v1321 = vpop.f32.mrf.mxu0
        %v1322 = vpop.f32.mrf.mxu0
        %v1323 = vadd.f32 %v374, %v1322
        %v1324 = vpop.f32.mrf.mxu0
        %1325 = vmatprep.mubr.bf16.mxu0 %v784
        %1326 = vmatmul.mubr.bf16.gmra.mxu0 %v783
        %v1327 = vpop.f32.mrf.mxu0
        %v1328 = vadd.f32 %v374, %v1327
        %v1329 = vpop.f32.mrf.mxu0
        %v1330 = vpop.f32.mrf.mxu0
        %v1331 = vadd.f32 %v374, %v1330
        %v1332 = vpop.f32.mrf.mxu0
        %1333 = vmatprep.mubr.bf16.mxu0 %v787
        %1334 = vmatmul.mubr.bf16.gmra.mxu0 %v786
        %v1335 = vpop.f32.mrf.mxu0
        %v1336 = vadd.f32 %v374, %v1335
        %v1337 = vpop.f32.mrf.mxu0
        %v1338 = vpop.f32.mrf.mxu0
        %v1339 = vadd.f32 %v374, %v1338
        %v1340 = vpop.f32.mrf.mxu0
        %1341 = vmatprep.mubr.bf16.mxu0 %v790
        %1342 = vmatmul.mubr.bf16.gmra.mxu0 %v789
        %v1343 = vpop.f32.mrf.mxu0
        %v1344 = vadd.f32 %v374, %v1343
        %v1345 = vpop.f32.mrf.mxu0
        %v1346 = vpop.f32.mrf.mxu0
        %v1347 = vadd.f32 %v374, %v1346
        %v1348 = vpop.f32.mrf.mxu0
        %1349 = vdwg.mxu0
        %1350 = vmatprep.subr.bf16.mxu0 0
        %1351 = vmatpush1.bf16.msra.mxu0 0
        %1352 = vmatprep.subr.bf16.mxu0 0
        %1353 = vmatpush1.bf16.msra.mxu0 0
        %1354 = vmatprep.subr.bf16.mxu0 0
        %1355 = vmatpush1.bf16.msra.mxu0 0
        %1356 = vmatprep.subr.bf16.mxu0 0
        %1357 = vmatpush1.bf16.msra.mxu0 0
        %1358 = vmatprep.subr.bf16.mxu0 0
        %1359 = vmatpush1.bf16.msra.mxu0 0
        %1360 = vmatprep.subr.bf16.mxu0 0
        %1361 = vmatpush1.bf16.msra.mxu0 0
        %1362 = vmatprep.subr.bf16.mxu0 0
        %1363 = vmatpush1.bf16.msra.mxu0 %v945
        %1364 = vmatprep.subr.bf16.mxu0 0
        %1365 = vmatpush1.bf16.msra.mxu0 %v944
        %1366 = vmatprep.subr.bf16.mxu0 0
        %1367 = vmatpush2.bf16.msra.mxu0 0
        %1368 = vmatprep.subr.bf16.mxu0 0
        %1369 = vmatpush2.bf16.msra.mxu0 0
        %1370 = vmatprep.subr.bf16.mxu0 0
        %1371 = vmatpush2.bf16.msra.mxu0 0
        %1372 = vmatprep.subr.bf16.mxu0 0
        %1373 = vmatpush2.bf16.msra.mxu0 0
        %1374 = vmatprep.subr.bf16.mxu0 0
        %1375 = vmatpush2.bf16.msra.mxu0 0
        %1376 = vmatprep.subr.bf16.mxu0 0
        %1377 = vmatpush2.bf16.msra.mxu0 0
        %1378 = vmatprep.subr.bf16.mxu0 0
        %1379 = vmatpush2.bf16.msra.mxu0 0
        %1380 = vmatprep.subr.bf16.mxu0 0
        %1381 = vmatpush2.bf16.msra.mxu0 0
        %1382 = vmatprep.mubr.bf16.mxu0 0
        %1383 = vmatmul.mubr.bf16.gmra.mxu0 %v966
        %v1384 = vpop.f32.mrf.mxu0
        %v1385 = vadd.f32 %v1096, %v1384
        %v1386 = vpop.f32.mrf.mxu0
        %v1387 = vpop.f32.mrf.mxu0
        %v1388 = vadd.f32 %v1099, %v1387
        %v1389 = vpop.f32.mrf.mxu0
        %1390 = vmatprep.mubr.bf16.mxu0 0
        %1391 = vmatmul.mubr.bf16.gmra.mxu0 %v969
        %v1392 = vpop.f32.mrf.mxu0
        %v1393 = vadd.f32 %v1104, %v1392
        %v1394 = vpop.f32.mrf.mxu0
        %v1395 = vpop.f32.mrf.mxu0
        %v1396 = vadd.f32 %v1107, %v1395
        %v1397 = vpop.f32.mrf.mxu0
        %1398 = vmatprep.mubr.bf16.mxu0 0
        %1399 = vmatmul.mubr.bf16.gmra.mxu0 %v972
        %v1400 = vpop.f32.mrf.mxu0
        %v1401 = vadd.f32 %v1112, %v1400
        %v1402 = vpop.f32.mrf.mxu0
        %v1403 = vpop.f32.mrf.mxu0
        %v1404 = vadd.f32 %v1115, %v1403
        %v1405 = vpop.f32.mrf.mxu0
        %1406 = vmatprep.mubr.bf16.mxu0 0
        %1407 = vmatmul.mubr.bf16.gmra.mxu0 %v975
        %v1408 = vpop.f32.mrf.mxu0
        %v1409 = vadd.f32 %v1120, %v1408
        %v1410 = vpop.f32.mrf.mxu0
        %v1411 = vpop.f32.mrf.mxu0
        %v1412 = vadd.f32 %v1123, %v1411
        %v1413 = vpop.f32.mrf.mxu0
        %1414 = vmatprep.mubr.bf16.mxu0 0
        %1415 = vmatmul.mubr.bf16.gmra.mxu0 %v978
        %v1416 = vpop.f32.mrf.mxu0
        %v1417 = vadd.f32 %v1128, %v1416
        %v1418 = vpop.f32.mrf.mxu0
        %v1419 = vpop.f32.mrf.mxu0
        %v1420 = vadd.f32 %v1131, %v1419
        %v1421 = vpop.f32.mrf.mxu0
        %1422 = vmatprep.mubr.bf16.mxu0 0
        %1423 = vmatmul.mubr.bf16.gmra.mxu0 %v981
        %v1424 = vpop.f32.mrf.mxu0
        %v1425 = vadd.f32 %v1136, %v1424
        %v1426 = vpop.f32.mrf.mxu0
        %v1427 = vpop.f32.mrf.mxu0
        %v1428 = vadd.f32 %v1139, %v1427
        %v1429 = vpop.f32.mrf.mxu0
        %1430 = vmatprep.mubr.bf16.mxu0 0
        %1431 = vmatmul.mubr.bf16.gmra.mxu0 %v984
        %v1432 = vpop.f32.mrf.mxu0
        %v1433 = vadd.f32 %v1144, %v1432
        %v1434 = vpop.f32.mrf.mxu0
        %v1435 = vpop.f32.mrf.mxu0
        %v1436 = vadd.f32 %v1147, %v1435
        %v1437 = vpop.f32.mrf.mxu0
        %1438 = vmatprep.mubr.bf16.mxu0 0
        %1439 = vmatmul.mubr.bf16.gmra.mxu0 %v987
        %v1440 = vpop.f32.mrf.mxu0
        %v1441 = vadd.f32 %v1152, %v1440
        %v1442 = vpop.f32.mrf.mxu0
        %v1443 = vpop.f32.mrf.mxu0
        %v1444 = vadd.f32 %v1155, %v1443
        %v1445 = vpop.f32.mrf.mxu0
        %1446 = vmatprep.mubr.bf16.mxu0 0
        %1447 = vmatmul.mubr.bf16.gmra.mxu0 %v990
        %v1448 = vpop.f32.mrf.mxu0
        %v1449 = vadd.f32 %v1160, %v1448
        %v1450 = vpop.f32.mrf.mxu0
        %v1451 = vpop.f32.mrf.mxu0
        %v1452 = vadd.f32 %v1163, %v1451
        %v1453 = vpop.f32.mrf.mxu0
        %1454 = vmatprep.mubr.bf16.mxu0 0
        %1455 = vmatmul.mubr.bf16.gmra.mxu0 %v993
        %v1456 = vpop.f32.mrf.mxu0
        %v1457 = vadd.f32 %v1168, %v1456
        %v1458 = vpop.f32.mrf.mxu0
        %v1459 = vpop.f32.mrf.mxu0
        %v1460 = vadd.f32 %v1171, %v1459
        %v1461 = vpop.f32.mrf.mxu0
        %1462 = vmatprep.mubr.bf16.mxu0 0
        %1463 = vmatmul.mubr.bf16.gmra.mxu0 %v996
        %v1464 = vpop.f32.mrf.mxu0
        %v1465 = vadd.f32 %v1176, %v1464
        %v1466 = vpop.f32.mrf.mxu0
        %v1467 = vpop.f32.mrf.mxu0
        %v1468 = vadd.f32 %v1179, %v1467
        %v1469 = vpop.f32.mrf.mxu0
        %1470 = vmatprep.mubr.bf16.mxu0 0
        %1471 = vmatmul.mubr.bf16.gmra.mxu0 %v999
        %v1472 = vpop.f32.mrf.mxu0
        %v1473 = vadd.f32 %v1184, %v1472
        %v1474 = vpop.f32.mrf.mxu0
        %v1475 = vpop.f32.mrf.mxu0
        %v1476 = vadd.f32 %v1187, %v1475
        %v1477 = vpop.f32.mrf.mxu0
        %1478 = vmatprep.mubr.bf16.mxu0 0
        %1479 = vmatmul.mubr.bf16.gmra.mxu0 %v1002
        %v1480 = vpop.f32.mrf.mxu0
        %v1481 = vadd.f32 %v1192, %v1480
        %v1482 = vpop.f32.mrf.mxu0
        %v1483 = vpop.f32.mrf.mxu0
        %v1484 = vadd.f32 %v1195, %v1483
        %v1485 = vpop.f32.mrf.mxu0
        %1486 = vmatprep.mubr.bf16.mxu0 0
        %1487 = vmatmul.mubr.bf16.gmra.mxu0 %v1005
        %v1488 = vpop.f32.mrf.mxu0
        %v1489 = vadd.f32 %v1200, %v1488
        %v1490 = vpop.f32.mrf.mxu0
        %v1491 = vpop.f32.mrf.mxu0
        %v1492 = vadd.f32 %v1203, %v1491
        %v1493 = vpop.f32.mrf.mxu0
        %1494 = vmatprep.mubr.bf16.mxu0 0
        %1495 = vmatmul.mubr.bf16.gmra.mxu0 %v1008
        %v1496 = vpop.f32.mrf.mxu0
        %v1497 = vadd.f32 %v1208, %v1496
        %v1498 = vpop.f32.mrf.mxu0
        %v1499 = vpop.f32.mrf.mxu0
        %v1500 = vadd.f32 %v1211, %v1499
        %v1501 = vpop.f32.mrf.mxu0
        %1502 = vmatprep.mubr.bf16.mxu0 0
        %1503 = vmatmul.mubr.bf16.gmra.mxu0 %v1011
        %v1504 = vpop.f32.mrf.mxu0
        %v1505 = vadd.f32 %v1216, %v1504
        %v1506 = vpop.f32.mrf.mxu0
        %v1507 = vpop.f32.mrf.mxu0
        %v1508 = vadd.f32 %v1219, %v1507
        %v1509 = vpop.f32.mrf.mxu0
        %1510 = vmatprep.mubr.bf16.mxu0 0
        %1511 = vmatmul.mubr.bf16.gmra.mxu0 %v1014
        %v1512 = vpop.f32.mrf.mxu0
        %v1513 = vadd.f32 %v1224, %v1512
        %v1514 = vpop.f32.mrf.mxu0
        %v1515 = vpop.f32.mrf.mxu0
        %v1516 = vadd.f32 %v1227, %v1515
        %v1517 = vpop.f32.mrf.mxu0
        %1518 = vmatprep.mubr.bf16.mxu0 0
        %1519 = vmatmul.mubr.bf16.gmra.mxu0 %v1017
        %v1520 = vpop.f32.mrf.mxu0
        %v1521 = vadd.f32 %v1232, %v1520
        %v1522 = vpop.f32.mrf.mxu0
        %v1523 = vpop.f32.mrf.mxu0
        %v1524 = vadd.f32 %v1235, %v1523
        %v1525 = vpop.f32.mrf.mxu0
        %1526 = vmatprep.mubr.bf16.mxu0 0
        %1527 = vmatmul.mubr.bf16.gmra.mxu0 %v1020
        %v1528 = vpop.f32.mrf.mxu0
        %v1529 = vadd.f32 %v1240, %v1528
        %v1530 = vpop.f32.mrf.mxu0
        %v1531 = vpop.f32.mrf.mxu0
        %v1532 = vadd.f32 %v1243, %v1531
        %v1533 = vpop.f32.mrf.mxu0
        %1534 = vmatprep.mubr.bf16.mxu0 0
        %1535 = vmatmul.mubr.bf16.gmra.mxu0 %v1023
        %v1536 = vpop.f32.mrf.mxu0
        %v1537 = vadd.f32 %v1248, %v1536
        %v1538 = vpop.f32.mrf.mxu0
        %v1539 = vpop.f32.mrf.mxu0
        %v1540 = vadd.f32 %v1251, %v1539
        %v1541 = vpop.f32.mrf.mxu0
        %1542 = vmatprep.mubr.bf16.mxu0 0
        %1543 = vmatmul.mubr.bf16.gmra.mxu0 %v1026
        %v1544 = vpop.f32.mrf.mxu0
        %v1545 = vadd.f32 %v1256, %v1544
        %v1546 = vpop.f32.mrf.mxu0
        %v1547 = vpop.f32.mrf.mxu0
        %v1548 = vadd.f32 %v1259, %v1547
        %v1549 = vpop.f32.mrf.mxu0
        %1550 = vmatprep.mubr.bf16.mxu0 0
        %1551 = vmatmul.mubr.bf16.gmra.mxu0 %v1029
        %v1552 = vpop.f32.mrf.mxu0
        %v1553 = vadd.f32 %v1264, %v1552
        %v1554 = vpop.f32.mrf.mxu0
        %v1555 = vpop.f32.mrf.mxu0
        %v1556 = vadd.f32 %v1267, %v1555
        %v1557 = vpop.f32.mrf.mxu0
        %1558 = vmatprep.mubr.bf16.mxu0 0
        %1559 = vmatmul.mubr.bf16.gmra.mxu0 %v1032
        %v1560 = vpop.f32.mrf.mxu0
        %v1561 = vadd.f32 %v1272, %v1560
        %v1562 = vpop.f32.mrf.mxu0
        %v1563 = vpop.f32.mrf.mxu0
        %v1564 = vadd.f32 %v1275, %v1563
        %v1565 = vpop.f32.mrf.mxu0
        %1566 = vmatprep.mubr.bf16.mxu0 0
        %1567 = vmatmul.mubr.bf16.gmra.mxu0 %v1035
        %v1568 = vpop.f32.mrf.mxu0
        %v1569 = vadd.f32 %v1280, %v1568
        %v1570 = vpop.f32.mrf.mxu0
        %v1571 = vpop.f32.mrf.mxu0
        %v1572 = vadd.f32 %v1283, %v1571
        %v1573 = vpop.f32.mrf.mxu0
        %1574 = vmatprep.mubr.bf16.mxu0 0
        %1575 = vmatmul.mubr.bf16.gmra.mxu0 %v1038
        %v1576 = vpop.f32.mrf.mxu0
        %v1577 = vadd.f32 %v1288, %v1576
        %v1578 = vpop.f32.mrf.mxu0
        %v1579 = vpop.f32.mrf.mxu0
        %v1580 = vadd.f32 %v1291, %v1579
        %v1581 = vpop.f32.mrf.mxu0
        %1582 = vmatprep.mubr.bf16.mxu0 0
        %1583 = vmatmul.mubr.bf16.gmra.mxu0 %v1041
        %v1584 = vpop.f32.mrf.mxu0
        %v1585 = vadd.f32 %v1296, %v1584
        %v1586 = vpop.f32.mrf.mxu0
        %v1587 = vpop.f32.mrf.mxu0
        %v1588 = vadd.f32 %v1299, %v1587
        %v1589 = vpop.f32.mrf.mxu0
        %1590 = vmatprep.mubr.bf16.mxu0 0
        %1591 = vmatmul.mubr.bf16.gmra.mxu0 %v1044
        %v1592 = vpop.f32.mrf.mxu0
        %v1593 = vadd.f32 %v1304, %v1592
        %v1594 = vpop.f32.mrf.mxu0
        %v1595 = vpop.f32.mrf.mxu0
        %v1596 = vadd.f32 %v1307, %v1595
        %v1597 = vpop.f32.mrf.mxu0
        %1598 = vmatprep.mubr.bf16.mxu0 0
        %1599 = vmatmul.mubr.bf16.gmra.mxu0 %v1047
        %v1600 = vpop.f32.mrf.mxu0
        %v1601 = vadd.f32 %v1312, %v1600
        %v1602 = vpop.f32.mrf.mxu0
        %v1603 = vpop.f32.mrf.mxu0
        %v1604 = vadd.f32 %v1315, %v1603
        %v1605 = vpop.f32.mrf.mxu0
        %1606 = vmatprep.mubr.bf16.mxu0 0
        %1607 = vmatmul.mubr.bf16.gmra.mxu0 %v1050
        %v1608 = vpop.f32.mrf.mxu0
        %v1609 = vadd.f32 %v1320, %v1608
        %v1610 = vpop.f32.mrf.mxu0
        %v1611 = vpop.f32.mrf.mxu0
        %v1612 = vadd.f32 %v1323, %v1611
        %v1613 = vpop.f32.mrf.mxu0
        %1614 = vmatprep.mubr.bf16.mxu0 0
        %1615 = vmatmul.mubr.bf16.gmra.mxu0 %v1053
        %v1616 = vpop.f32.mrf.mxu0
        %v1617 = vadd.f32 %v1328, %v1616
        %v1618 = vpop.f32.mrf.mxu0
        %v1619 = vpop.f32.mrf.mxu0
        %v1620 = vadd.f32 %v1331, %v1619
        %v1621 = vpop.f32.mrf.mxu0
        %1622 = vmatprep.mubr.bf16.mxu0 0
        %1623 = vmatmul.mubr.bf16.gmra.mxu0 %v1056
        %v1624 = vpop.f32.mrf.mxu0
        %v1625 = vadd.f32 %v1336, %v1624
        %v1626 = vpop.f32.mrf.mxu0
        %v1627 = vpop.f32.mrf.mxu0
        %v1628 = vadd.f32 %v1339, %v1627
        %v1629 = vpop.f32.mrf.mxu0
        %1630 = vmatprep.mubr.bf16.mxu0 0
        %1631 = vmatmul.mubr.bf16.gmra.mxu0 %v1059
        %v1632 = vpop.f32.mrf.mxu0
        %v1633 = vadd.f32 %v1344, %v1632
        %v1634 = vpop.f32.mrf.mxu0
        %v1635 = vpop.f32.mrf.mxu0
        %v1636 = vadd.f32 %v1347, %v1635
        %v1637 = vpop.f32.mrf.mxu0
        %1638 = vdwg.mxu0
        %v1639 = vmax.f32 %v1385, 0.0
        %v1640 = vmax.f32 %v1388, 0.0
        %v1641 = vmax.f32 %v1393, 0.0
        %v1642 = vmax.f32 %v1396, 0.0
        %v1643 = vmax.f32 %v1401, 0.0
        %v1644 = vmax.f32 %v1404, 0.0
        %v1645 = vmax.f32 %v1409, 0.0
        %v1646 = vmax.f32 %v1412, 0.0
        %v1647 = vmax.f32 %v1417, 0.0
        %v1648 = vmax.f32 %v1420, 0.0
        %v1649 = vmax.f32 %v1425, 0.0
        %v1650 = vmax.f32 %v1428, 0.0
        %v1651 = vmax.f32 %v1433, 0.0
        %v1652 = vmax.f32 %v1436, 0.0
        %v1653 = vmax.f32 %v1441, 0.0
        %v1654 = vmax.f32 %v1444, 0.0
        %v1655 = vmax.f32 %v1449, 0.0
        %v1656 = vmax.f32 %v1452, 0.0
        %v1657 = vmax.f32 %v1457, 0.0
        %v1658 = vmax.f32 %v1460, 0.0
        %v1659 = vmax.f32 %v1465, 0.0
        %v1660 = vmax.f32 %v1468, 0.0
        %v1661 = vmax.f32 %v1473, 0.0
        %v1662 = vmax.f32 %v1476, 0.0
        %v1663 = vmax.f32 %v1481, 0.0
        %v1664 = vmax.f32 %v1484, 0.0
        %v1665 = vmax.f32 %v1489, 0.0
        %v1666 = vmax.f32 %v1492, 0.0
        %v1667 = vmax.f32 %v1497, 0.0
        %v1668 = vmax.f32 %v1500, 0.0
        %v1669 = vmax.f32 %v1505, 0.0
        %v1670 = vmax.f32 %v1508, 0.0
        %v1671 = vmax.f32 %v1513, 0.0
        %v1672 = vmax.f32 %v1516, 0.0
        %v1673 = vmax.f32 %v1521, 0.0
        %v1674 = vmax.f32 %v1524, 0.0
        %v1675 = vmax.f32 %v1529, 0.0
        %v1676 = vmax.f32 %v1532, 0.0
        %v1677 = vmax.f32 %v1537, 0.0
        %v1678 = vmax.f32 %v1540, 0.0
        %v1679 = vmax.f32 %v1545, 0.0
        %v1680 = vmax.f32 %v1548, 0.0
        %v1681 = vmax.f32 %v1553, 0.0
        %v1682 = vmax.f32 %v1556, 0.0
        %v1683 = vmax.f32 %v1561, 0.0
        %v1684 = vmax.f32 %v1564, 0.0
        %v1685 = vmax.f32 %v1569, 0.0
        %v1686 = vmax.f32 %v1572, 0.0
        %v1687 = vmax.f32 %v1577, 0.0
        %v1688 = vmax.f32 %v1580, 0.0
        %v1689 = vmax.f32 %v1585, 0.0
        %v1690 = vmax.f32 %v1588, 0.0
        %v1691 = vmax.f32 %v1593, 0.0
        %v1692 = vmax.f32 %v1596, 0.0
        %v1693 = vmax.f32 %v1601, 0.0
        %v1694 = vmax.f32 %v1604, 0.0
        %v1695 = vmax.f32 %v1609, 0.0
        %v1696 = vmax.f32 %v1612, 0.0
        %v1697 = vmax.f32 %v1617, 0.0
        %v1698 = vmax.f32 %v1620, 0.0
        %v1699 = vmax.f32 %v1625, 0.0
        %v1700 = vmax.f32 %v1628, 0.0
        %v1701 = vmax.f32 %v1633, 0.0
        %v1702 = vmax.f32 %v1636, 0.0
        %1703 = vst [vmem:[%s181] sm:$0xff] %v1639
        %1704 = vst [vmem:[%s181 + $0x8] sm:$0xff] %v1640
        %1705 = vst [vmem:[%s181 + $0x10] sm:$0xff] %v1641
        %1706 = vst [vmem:[%s181 + $0x18] sm:$0xff] %v1642
        %1707 = vst [vmem:[%s181 + $0x20] sm:$0xff] %v1643
        %1708 = vst [vmem:[%s181 + $0x28] sm:$0xff] %v1644
        %1709 = vst [vmem:[%s181 + $0x30] sm:$0xff] %v1645
        %1710 = vst [vmem:[%s181 + $0x38] sm:$0xff] %v1646
        %1711 = vst [vmem:[%s181 + $0x40] sm:$0xff] %v1647
        %1712 = vst [vmem:[%s181 + $0x48] sm:$0xff] %v1648
        %1713 = vst [vmem:[%s181 + $0x50] sm:$0xff] %v1649
        %1714 = vst [vmem:[%s181 + $0x58] sm:$0xff] %v1650
        %1715 = vst [vmem:[%s181 + $0x60] sm:$0xff] %v1651
        %1716 = vst [vmem:[%s181 + $0x68] sm:$0xff] %v1652
        %1717 = vst [vmem:[%s181 + $0x70] sm:$0xff] %v1653
        %1718 = vst [vmem:[%s181 + $0x78] sm:$0xff] %v1654
        %1719 = vst [vmem:[%s181 + $0x80] sm:$0xff] %v1655
        %1720 = vst [vmem:[%s181 + $0x88] sm:$0xff] %v1656
        %1721 = vst [vmem:[%s181 + $0x90] sm:$0xff] %v1657
        %1722 = vst [vmem:[%s181 + $0x98] sm:$0xff] %v1658
        %1723 = vst [vmem:[%s181 + $0xa0] sm:$0xff] %v1659
        %1724 = vst [vmem:[%s181 + $0xa8] sm:$0xff] %v1660
        %1725 = vst [vmem:[%s181 + $0xb0] sm:$0xff] %v1661
        %1726 = vst [vmem:[%s181 + $0xb8] sm:$0xff] %v1662
        %1727 = vst [vmem:[%s181 + $0xc0] sm:$0xff] %v1663
        %1728 = vst [vmem:[%s181 + $0xc8] sm:$0xff] %v1664
        %1729 = vst [vmem:[%s181 + $0xd0] sm:$0xff] %v1665
        %1730 = vst [vmem:[%s181 + $0xd8] sm:$0xff] %v1666
        %1731 = vst [vmem:[%s181 + $0xe0] sm:$0xff] %v1667
        %1732 = vst [vmem:[%s181 + $0xe8] sm:$0xff] %v1668
        %1733 = vst [vmem:[%s181 + $0xf0] sm:$0xff] %v1669
        %1734 = vst [vmem:[%s181 + $0xf8] sm:$0xff] %v1670
        %1735 = vst [vmem:[%s181 + $0x100] sm:$0xff] %v1671
        %1736 = vst [vmem:[%s181 + $0x108] sm:$0xff] %v1672
        %1737 = vst [vmem:[%s181 + $0x110] sm:$0xff] %v1673
        %1738 = vst [vmem:[%s181 + $0x118] sm:$0xff] %v1674
        %1739 = vst [vmem:[%s181 + $0x120] sm:$0xff] %v1675
        %1740 = vst [vmem:[%s181 + $0x128] sm:$0xff] %v1676
        %1741 = vst [vmem:[%s181 + $0x130] sm:$0xff] %v1677
        %1742 = vst [vmem:[%s181 + $0x138] sm:$0xff] %v1678
        %1743 = vst [vmem:[%s181 + $0x140] sm:$0xff] %v1679
        %1744 = vst [vmem:[%s181 + $0x148] sm:$0xff] %v1680
        %1745 = vst [vmem:[%s181 + $0x150] sm:$0xff] %v1681
        %1746 = vst [vmem:[%s181 + $0x158] sm:$0xff] %v1682
        %1747 = vst [vmem:[%s181 + $0x160] sm:$0xff] %v1683
        %1748 = vst [vmem:[%s181 + $0x168] sm:$0xff] %v1684
        %1749 = vst [vmem:[%s181 + $0x170] sm:$0xff] %v1685
        %1750 = vst [vmem:[%s181 + $0x178] sm:$0xff] %v1686
        %1751 = vst [vmem:[%s181 + $0x180] sm:$0xff] %v1687
        %1752 = vst [vmem:[%s181 + $0x188] sm:$0xff] %v1688
        %1753 = vst [vmem:[%s181 + $0x190] sm:$0xff] %v1689
        %1754 = vst [vmem:[%s181 + $0x198] sm:$0xff] %v1690
        %1755 = vst [vmem:[%s181 + $0x1a0] sm:$0xff] %v1691
        %1756 = vst [vmem:[%s181 + $0x1a8] sm:$0xff] %v1692
        %1757 = vst [vmem:[%s181 + $0x1b0] sm:$0xff] %v1693
        %1758 = vst [vmem:[%s181 + $0x1b8] sm:$0xff] %v1694
        %1759 = vst [vmem:[%s181 + $0x1c0] sm:$0xff] %v1695
        %1760 = vst [vmem:[%s181 + $0x1c8] sm:$0xff] %v1696
        %1761 = vst [vmem:[%s181 + $0x1d0] sm:$0xff] %v1697
        %1762 = vst [vmem:[%s181 + $0x1d8] sm:$0xff] %v1698
        %1763 = vst [vmem:[%s181 + $0x1e0] sm:$0xff] %v1699
        %1764 = vst [vmem:[%s181 + $0x1e8] sm:$0xff] %v1700
        %1765 = vst [vmem:[%s181 + $0x1f0] sm:$0xff] %v1701
        %1766 = vst [vmem:[%s181 + $0x1f8] sm:$0xff] %v1702
        %s1767 = sand.u32 %s93, 1
        %s1768 = scalar_lea.sflag [#allocation3], %s1767
        %s1769 = sand.u32 %s93, 1
        %s1770 = smul.addr %s1769, 512
        %s1771 = scalar_lea.vmem [#allocation2], %s1770
        // Predicated region
        $region33: #{tpu_custom_call.1} parent=31 // pred_check
          %p1772 = pneg %p103
        $region34: #{tpu_custom_call.1} parent=31 // pred_check_branch
          %1774 = sbr.rel (%p1772) target = $region36
        $region35: #{tpu_custom_call.1} parent=31 // pred_region
          %s1775 = smul.u32 64, %s17
          %s1776 = ssub.s32 138, %s1775
          %p1777 = scmp.lt.s32.totalorder %s1776, 64
          %s1778 = scalar_select %p1777, %s1776, 64
          %s1779 = smul.u32 128, %s1778
          %s1781 = ssub.s32 8192, %s1779
          %1782 = vsyncadd %s1768, %s1781
          %p1783 = scmp.ne.s32.totalorder 0, %s1779
          %s1784 = smul.addr %s1775, 128
          %s1785 = scalar_lea.hbm %s3, %s1784
          %s1786 = smul.u32 8, %s1778
          %s1787 = sshll.u32 %s1771, 4
          %s1788 = int_to_ptr.vmem [resolvable:$true] %s1787
          %s1789 = sshll.u32 %s1786, 4
          %1793 = dma.vmem_to_hbm [thread:$0]  (%p1783), %s1788, %s1789, %s1785, %s1768, 128, 128, 8
        $region36: #{tpu_custom_call.1} parent=31 // pred_fallthru
          _
      $region32: #{tpu_custom_call.1} parent=5 // pred_fallthru
        _
      %p1794 = scmp.le.s32.totalorder 2, %s12
      // Predicated region
      $region37: #{tpu_custom_call.1} parent=5 // pred_check
        %p1795 = pneg %p1794
      $region38: #{tpu_custom_call.1} parent=5 // pred_check_branch
        %1797 = sbr.rel (%p1795) target = $region40
      $region39: #{tpu_custom_call.1} parent=5 // pred_region
        %s1798 = ssub.s32 %s12, 2
        // Predicated region
        $region41: #{tpu_custom_call.1} parent=39 // pred_check
          %p1799 = pneg %p109
        $region42: #{tpu_custom_call.1} parent=39 // pred_check_branch
          %1801 = sbr.rel (%p1799) target = $region44
        $region43: #{tpu_custom_call.1} parent=39 // pred_region
          %s1802 = sand.u32 %s94, 1
          %s1803 = scalar_lea.sflag [#allocation3], %s1802
          %s1804 = sand.u32 %s94, 1
          %s1805 = smul.addr %s1804, 512
          %s1806 = scalar_lea.vmem [#allocation2], %s1805
          %1807 = dma.done %s1803, 8192
        $region44: #{tpu_custom_call.1} parent=39 // pred_fallthru
          _
      $region40: #{tpu_custom_call.1} parent=5 // pred_fallthru
        _
    $region6: #{tpu_custom_call.1} parent=1 // loop_footer
      %s16 = sadd.s32 1, %s12
    $region7: #{tpu_custom_call.1} parent=1 // loop_footer_branch
      %11 = sbr.rel target = $region3
    $region8: #{tpu_custom_call.1} parent=1 // loop_exit
      _
    %1808 = vsyncpa [#allocation3], 1
    %s1809 = scalar_lea.sflag [#allocation3], 1
    %1810 = vsyncpa %s1809, 1

</llo_original>
